<compile_context>
chip_gen: v5e
topology: v5e:2x2
jax: 0.10.0
libtpu: 0.0.40
codegen_flags: <defaults>
</compile_context>

<pallas_src>
import functools

import jax
import jax.numpy as jnp
from jax.experimental import pallas as pl
from jax.experimental.pallas import tpu as pltpu


def _attractor_kernel(x_ref, bp_ref, w1_ref, w2_ref, bnew_ref, Bc_ref, *,
                      n_attractors, n_bins, alpha, gamma,
                      min_depth, max_depth, kind, attractor_type, eps):
    # ---- 1x1 conv MLP (biases folded into the weights) ----------------------
    # x_ref block: (1, C+1, HW_T); last input channel is a constant 1.
    x = x_ref[0]                                                    # (C+1, HW_T)
    # w1: (mlp+1, C+1); last row is [0..0, 1] so h1's last row is a constant 1.
    h1 = jnp.maximum(
        jnp.dot(w1_ref[...], x, preferred_element_type=jnp.float32), 0.0)
    # w2: (n_attr, mlp+1); last column carries b2 (even rows only).
    a = jnp.maximum(
        jnp.dot(w2_ref[...], h1, preferred_element_type=jnp.float32), 0.0) + eps

    # ---- attractor interaction:  delta_c[j] = sum_i dist(a_i - c_j) ---------
    c = bp_ref[0]                                                   # (n_bins, HW_T)
    delta = jnp.zeros_like(c)
    for i in range(n_attractors):
        dx = a[i:i + 1, :] - c                                      # (n_bins, HW_T)
        if attractor_type == 'exp':
            mag = dx * dx if gamma == 2 else jnp.abs(dx) ** gamma
            delta = delta + jnp.exp(-alpha * mag) * dx
        else:  # 'inv' : dx / (1 + alpha * dx**gamma)  (signed power, exact div)
            pw = dx * dx if gamma == 2 else dx ** gamma
            delta = delta + dx / (1.0 + alpha * pw)
    if kind == 'mean':
        delta = delta * (1.0 / float(n_attractors))

    b_new = c + delta
    bnew_ref[0] = b_new                                             # lane-dense store

    # ---- scale to metric depth, sort along the bin axis, clip ---------------
    B = (max_depth - min_depth) * b_new + min_depth                 # (n_bins, HW_T)

    if n_bins > 1:
        if n_bins % 2 == 0:
            # Odd-even transposition sort on de-interleaved half-slabs:
            # E holds rows 0,2,4,...  O holds rows 1,3,5,...
            nh = n_bins // 2
            E = jnp.concatenate([B[i:i + 1, :] for i in range(0, n_bins, 2)], axis=0)
            O = jnp.concatenate([B[i:i + 1, :] for i in range(1, n_bins, 2)], axis=0)
            for p in range(n_bins):
                if p % 2 == 0:
                    # pairs (2k, 2k+1) == (E[k], O[k]) -- pure compare-exchange
                    lo = jnp.minimum(E, O)
                    hi = jnp.maximum(E, O)
                    E, O = lo, hi
                else:
                    if nh > 1:
                        # pairs (2k+1, 2k+2) == (O[k], E[k+1]), k = 0..nh-2
                        oh = O[:nh - 1, :]
                        et = E[1:, :]
                        lo = jnp.minimum(oh, et)
                        hi = jnp.maximum(oh, et)
                        O = jnp.concatenate([lo, O[nh - 1:, :]], axis=0)
                        E = jnp.concatenate([E[:1, :], hi], axis=0)
            # Re-interleave once: rows 2k <- E[k], 2k+1 <- O[k].
            B = jnp.concatenate(
                [piece for k in range(nh)
                 for piece in (E[k:k + 1, :], O[k:k + 1, :])], axis=0)
        else:
            # Fallback (odd n_bins): masked odd-even transposition on full slab.
            rows = jax.lax.broadcasted_iota(jnp.int32, B.shape, 0)
            even_rows = (rows & 1) == 0
            odd_rows = jnp.logical_not(even_rows)
            for p in range(n_bins):
                nxt = jnp.concatenate([B[1:, :], B[n_bins - 1:, :]], axis=0)
                prv = jnp.concatenate([B[:1, :], B[:n_bins - 1, :]], axis=0)
                mn = jnp.minimum(B, nxt)
                mx = jnp.maximum(B, prv)
                take_min = even_rows if (p % 2 == 0) else odd_rows
                B = jnp.where(take_min, mn, mx)

    Bc_ref[0] = jnp.clip(B, min_depth, max_depth)                   # single store


def _pick_tiling(HW, N, hw_tile, lane=128):
    """Lane-aligned, roughly-equal HW tiles; >=2 (even) tiles when N == 1."""
    hw128 = -(-HW // lane) * lane
    max_tile = max(lane, (min(int(hw_tile), hw128) // lane) * lane)
    num_tiles = -(-hw128 // max_tile)
    if N == 1 and hw128 >= 2 * lane:
        cap = hw128 // lane
        want = max(num_tiles, 2)
        if want % 2 == 1 and want + 1 <= cap:
            want += 1                       # feed both v7x TensorCores evenly
        num_tiles = min(want, cap)
    per = -(-hw128 // num_tiles)
    tile = -(-per // lane) * lane
    num_tiles = -(-hw128 // tile)           # drop tiles that would be pure padding
    return tile, num_tiles, tile * num_tiles


def attractor_layer(x, b_prev, params, *, n_attractors, n_bins,
                    min_depth=0.001, max_depth=10.0, alpha=300.0, gamma=2,
                    kind='sum', attractor_type='exp', hw_tile=8192):
    """Pallas implementation of AttractorLayer.forward (prev_b_embedding=None).

    x:      (N, C, H, W)      float32 feature block
    b_prev: (N, n_bins, H, W) float32 previous normed bin centers
    params: (w1 (mlp, C), b1 (mlp,), w2 (2*n_attr, mlp), b2 (2*n_attr,))
    returns (b_new_centers, B_centers), both (N, n_bins, H, W)
    """
    w1, b1, w2, b2 = params
    N, C, H, W = x.shape
    assert b_prev.shape == (N, n_bins, H, W), \
        "TODO(synk): bilinear resize of b_prev to x's spatial size not implemented"
    HW = H * W
    mlp = w1.shape[0]

    # ---- lane-dense spatial tiling ------------------------------------------
    tile, num_tiles, hw_pad = _pick_tiling(HW, N, hw_tile)

    x2 = x.reshape(N, C, HW).astype(jnp.float32)
    ones = jnp.ones((N, 1, HW), jnp.float32)
    x2 = jnp.concatenate([x2, ones], axis=1)                # (N, C+1, HW), ones channel
    bp = b_prev.reshape(N, n_bins, HW).astype(jnp.float32)
    if hw_pad != HW:
        x2 = jnp.pad(x2, ((0, 0), (0, 0), (0, hw_pad - HW)))
        bp = jnp.pad(bp, ((0, 0), (0, 0), (0, hw_pad - HW)))

    # Only the even output channels of conv-2 survive the forward pass.
    w2e = w2[0::2].astype(jnp.float32)                      # (n_attr, mlp)
    b2e = b2[0::2].astype(jnp.float32)                      # (n_attr,)

    # Fold b1 / b2 into the matmuls:
    #   w1_aug = [[w1, b1], [0..0, 1]]     -> h1 last row is a constant 1 (post-ReLU)
    #   w2_aug = [w2_even | b2_even]
    w1_aug = jnp.zeros((mlp + 1, C + 1), jnp.float32)
    w1_aug = w1_aug.at[:mlp, :C].set(w1.astype(jnp.float32))
    w1_aug = w1_aug.at[:mlp, C].set(b1.astype(jnp.float32))
    w1_aug = w1_aug.at[mlp, C].set(1.0)
    w2_aug = jnp.concatenate([w2e, b2e[:, None]], axis=1)   # (n_attr, mlp+1)

    kernel = functools.partial(
        _attractor_kernel,
        n_attractors=n_attractors, n_bins=n_bins,
        alpha=float(alpha), gamma=int(gamma),
        min_depth=float(min_depth), max_depth=float(max_depth),
        kind=kind, attractor_type=attractor_type, eps=1e-3)

    grid_spec = pltpu.PrefetchScalarGridSpec(
        num_scalar_prefetch=0,
        grid=(N, num_tiles),
        in_specs=[
            pl.BlockSpec((1, C + 1, tile), lambda b, t: (b, 0, t)),           # x (+ones)
            pl.BlockSpec((1, n_bins, tile), lambda b, t: (b, 0, t)),          # b_prev
            pl.BlockSpec((mlp + 1, C + 1), lambda b, t: (0, 0)),              # w1_aug (resident)
            pl.BlockSpec((n_attractors, mlp + 1), lambda b, t: (0, 0)),       # w2_aug (resident)
        ],
        out_specs=[
            pl.BlockSpec((1, n_bins, tile), lambda b, t: (b, 0, t)),
            pl.BlockSpec((1, n_bins, tile), lambda b, t: (b, 0, t)),
        ],
    )

    b_new, B_c = pl.pallas_call(
        kernel,
        out_shape=(jax.ShapeDtypeStruct((N, n_bins, hw_pad), jnp.float32),
                   jax.ShapeDtypeStruct((N, n_bins, hw_pad), jnp.float32)),
        grid_spec=grid_spec,
        compiler_params=pltpu.CompilerParams(
            dimension_semantics=("parallel", "parallel"),
            vmem_limit_bytes=32 * 1024 * 1024),
    )(x2, bp, w1_aug, w2_aug)

    b_new = b_new[:, :, :HW].reshape(N, n_bins, H, W)
    B_c = B_c[:, :, :HW].reshape(N, n_bins, H, W)
    return b_new, B_c


def attractor_layer_reference(x, b_prev, params, *, n_attractors, n_bins,
                              min_depth=0.001, max_depth=10.0, alpha=300.0,
                              gamma=2, kind='sum', attractor_type='exp'):
    """Pure-JAX replica of the PyTorch forward (for verification)."""
    w1, b1, w2, b2 = params
    N, C, H, W = x.shape
    xf = x.reshape(N, C, H * W)
    h1 = jnp.maximum(jnp.einsum('oc,nci->noi', w1, xf) + b1[None, :, None], 0.0)
    A = jnp.maximum(jnp.einsum('om,nmi->noi', w2, h1) + b2[None, :, None], 0.0)
    A = A + 1e-3
    A = A.reshape(N, n_attractors, 2, H * W)
    a = A[:, :, 0, :]                                   # (N, n_attr, HW)
    c = b_prev.reshape(N, n_bins, H * W)
    dx = a[:, :, None, :] - c[:, None, :, :]            # (N, n_attr, n_bins, HW)
    if attractor_type == 'exp':
        d = jnp.exp(-alpha * jnp.abs(dx) ** gamma) * dx
    else:
        d = dx / (1.0 + alpha * dx ** gamma)
    red = jnp.mean if kind == 'mean' else jnp.sum
    delta = red(d, axis=1)
    b_new = c + delta
    B = (max_depth - min_depth) * b_new + min_depth
    B = jnp.sort(B, axis=1)
    B = jnp.clip(B, min_depth, max_depth)
    return b_new.reshape(N, n_bins, H, W), B.reshape(N, n_bins, H, W)


if __name__ == "__main__":
    # Small, forward-consistent shapes.
    N, C, H, W = 2, 8, 16, 16
    mlp_dim = 32
    n_attractors = 8
    n_bins = 16

    key = jax.random.PRNGKey(0)
    k_x, k_b, k_w1, k_b1, k_w2, k_b2 = jax.random.split(key, 6)

    x = jax.random.normal(k_x, (N, C, H, W), dtype=jnp.float32) * 0.5
    b_prev = jax.random.uniform(k_b, (N, n_bins, H, W), dtype=jnp.float32)

    # Deterministic synthetic parameters (Conv2d 1x1 == dense over channels).
    w1 = jax.random.normal(k_w1, (mlp_dim, C), dtype=jnp.float32) * (1.0 / C ** 0.5)
    b1 = jax.random.normal(k_b1, (mlp_dim,), dtype=jnp.float32) * 0.1
    w2 = jax.random.normal(k_w2, (2 * n_attractors, mlp_dim), dtype=jnp.float32) * (1.0 / mlp_dim ** 0.5)
    b2 = jax.random.normal(k_b2, (2 * n_attractors,), dtype=jnp.float32) * 0.1
    params = (w1, b1, w2, b2)

    # 'exp' attractor (module default).
    b_new, B_centers = attractor_layer(
        x, b_prev, params, n_attractors=n_attractors, n_bins=n_bins)
    jax.block_until_ready((b_new, B_centers))
    b_new_ref, B_ref = attractor_layer_reference(
        x, b_prev, params, n_attractors=n_attractors, n_bins=n_bins)
    assert b_new.shape == (N, n_bins, H, W) and B_centers.shape == (N, n_bins, H, W)
    assert jnp.allclose(b_new, b_new_ref, atol=1e-4, rtol=1e-4)
    assert jnp.allclose(B_centers, B_ref, atol=1e-4, rtol=1e-4)

    # 'inv' attractor path (exact divide) with kind='mean'.
    b_new_i, B_i = attractor_layer(
        x, b_prev, params, n_attractors=n_attractors, n_bins=n_bins,
        kind='mean', attractor_type='inv')
    jax.block_until_ready((b_new_i, B_i))
    b_new_i_ref, B_i_ref = attractor_layer_reference(
        x, b_prev, params, n_attractors=n_attractors, n_bins=n_bins,
        kind='mean', attractor_type='inv')
    assert jnp.allclose(b_new_i, b_new_i_ref, atol=1e-4, rtol=1e-4)
    assert jnp.allclose(B_i, B_i_ref, atol=1e-4, rtol=1e-4)

    print("KERNEL_OK")
</pallas_src>

<mosaic_0001>
module attributes {stable_mosaic.version = 11 : i64} {
  func.func @_attractor_kernel(%arg0: i32, %arg1: i32, %arg2: memref<1x9x256xf32, #tpu.memory_space<vmem>>, %arg3: memref<1x16x256xf32, #tpu.memory_space<vmem>>, %arg4: memref<33x9xf32, #tpu.memory_space<vmem>>, %arg5: memref<8x33xf32, #tpu.memory_space<vmem>>, %arg6: memref<1x16x256xf32, #tpu.memory_space<vmem>>, %arg7: memref<1x16x256xf32, #tpu.memory_space<vmem>>) attributes {dimension_semantics = [#tpu.dimension_semantics<parallel>, #tpu.dimension_semantics<parallel>], iteration_bounds = array<i64: 2, 1>, scalar_prefetch = 0 : i64, scratch_operands = 0 : i64, tpu.core_type = #tpu.core_type<tc>, window_params = [{transform_indices = @transform_0, window_bounds = array<i64: 1, 9, 256>}, {transform_indices = @transform_1, window_bounds = array<i64: 1, 16, 256>}, {pipeline_mode = #tpu.pipeline_mode<synchronous>, transform_indices = @transform_2, window_bounds = array<i64: 33, 9>}, {pipeline_mode = #tpu.pipeline_mode<synchronous>, transform_indices = @transform_3, window_bounds = array<i64: 8, 33>}, {transform_indices = @transform_4, window_bounds = array<i64: 1, 16, 256>}, {transform_indices = @transform_5, window_bounds = array<i64: 1, 16, 256>}]} {
    %c0 = arith.constant 0 : index
    %c0_0 = arith.constant 0 : index
    %c0_1 = arith.constant 0 : index
    %0 = vector.load %arg2[%c0, %c0_0, %c0_1] : memref<1x9x256xf32, #tpu.memory_space<vmem>>, vector<1x9x256xf32>
    %1 = vector.shape_cast %0 : vector<1x9x256xf32> to vector<9x256xf32>
    %c0_2 = arith.constant 0 : index
    %c0_3 = arith.constant 0 : index
    %2 = vector.load %arg4[%c0_2, %c0_3] : memref<33x9xf32, #tpu.memory_space<vmem>>, vector<33x9xf32>
    %cst = arith.constant dense<0.000000e+00> : vector<33x256xf32>
    %3 = tpu.matmul %2, %1, %cst {dimension_numbers = #tpu.dot_dimension_numbers<[1], [0], [0], [1], [0, 0, 1, 1], [], []>} : vector<33x9xf32>, vector<9x256xf32>, vector<33x256xf32> -> vector<33x256xf32>
    %cst_4 = arith.constant 0.000000e+00 : f32
    %4 = vector.broadcast %cst_4 : f32 to vector<33x256xf32>
    %5 = arith.maximumf %3, %4 : vector<33x256xf32>
    %c0_5 = arith.constant 0 : index
    %c0_6 = arith.constant 0 : index
    %6 = vector.load %arg5[%c0_5, %c0_6] : memref<8x33xf32, #tpu.memory_space<vmem>>, vector<8x33xf32>
    %cst_7 = arith.constant dense<0.000000e+00> : vector<8x256xf32>
    %7 = tpu.matmul %6, %5, %cst_7 {dimension_numbers = #tpu.dot_dimension_numbers<[1], [0], [0], [1], [0, 0, 1, 1], [], []>} : vector<8x33xf32>, vector<33x256xf32>, vector<8x256xf32> -> vector<8x256xf32>
    %cst_8 = arith.constant 0.000000e+00 : f32
    %8 = vector.broadcast %cst_8 : f32 to vector<8x256xf32>
    %9 = arith.maximumf %7, %8 : vector<8x256xf32>
    %cst_9 = arith.constant 1.000000e-03 : f32
    %10 = vector.broadcast %cst_9 : f32 to vector<8x256xf32>
    %11 = arith.addf %9, %10 : vector<8x256xf32>
    %c0_10 = arith.constant 0 : index
    %c0_11 = arith.constant 0 : index
    %c0_12 = arith.constant 0 : index
    %12 = vector.load %arg3[%c0_10, %c0_11, %c0_12] : memref<1x16x256xf32, #tpu.memory_space<vmem>>, vector<1x16x256xf32>
    %13 = vector.shape_cast %12 : vector<1x16x256xf32> to vector<16x256xf32>
    %cst_13 = arith.constant 0.000000e+00 : f32
    %14 = vector.broadcast %cst_13 : f32 to vector<16x256xf32>
    %15 = vector.extract_strided_slice %11 {offsets = [0, 0], sizes = [1, 256], strides = [1, 1]} : vector<8x256xf32> to vector<1x256xf32>
    %16 = vector.broadcast %15 : vector<1x256xf32> to vector<16x256xf32>
    %17 = arith.subf %16, %13 : vector<16x256xf32>
    %18 = arith.mulf %17, %17 : vector<16x256xf32>
    %cst_14 = arith.constant -3.000000e+02 : f32
    %19 = vector.broadcast %cst_14 : f32 to vector<16x256xf32>
    %20 = arith.mulf %19, %18 : vector<16x256xf32>
    %21 = math.exp %20 : vector<16x256xf32>
    %22 = arith.mulf %21, %17 : vector<16x256xf32>
    %23 = arith.addf %14, %22 : vector<16x256xf32>
    %24 = vector.extract_strided_slice %11 {offsets = [1, 0], sizes = [1, 256], strides = [1, 1]} : vector<8x256xf32> to vector<1x256xf32>
    %25 = vector.broadcast %24 : vector<1x256xf32> to vector<16x256xf32>
    %26 = arith.subf %25, %13 : vector<16x256xf32>
    %27 = arith.mulf %26, %26 : vector<16x256xf32>
    %cst_15 = arith.constant -3.000000e+02 : f32
    %28 = vector.broadcast %cst_15 : f32 to vector<16x256xf32>
    %29 = arith.mulf %28, %27 : vector<16x256xf32>
    %30 = math.exp %29 : vector<16x256xf32>
    %31 = arith.mulf %30, %26 : vector<16x256xf32>
    %32 = arith.addf %23, %31 : vector<16x256xf32>
    %33 = vector.extract_strided_slice %11 {offsets = [2, 0], sizes = [1, 256], strides = [1, 1]} : vector<8x256xf32> to vector<1x256xf32>
    %34 = vector.broadcast %33 : vector<1x256xf32> to vector<16x256xf32>
    %35 = arith.subf %34, %13 : vector<16x256xf32>
    %36 = arith.mulf %35, %35 : vector<16x256xf32>
    %cst_16 = arith.constant -3.000000e+02 : f32
    %37 = vector.broadcast %cst_16 : f32 to vector<16x256xf32>
    %38 = arith.mulf %37, %36 : vector<16x256xf32>
    %39 = math.exp %38 : vector<16x256xf32>
    %40 = arith.mulf %39, %35 : vector<16x256xf32>
    %41 = arith.addf %32, %40 : vector<16x256xf32>
    %42 = vector.extract_strided_slice %11 {offsets = [3, 0], sizes = [1, 256], strides = [1, 1]} : vector<8x256xf32> to vector<1x256xf32>
    %43 = vector.broadcast %42 : vector<1x256xf32> to vector<16x256xf32>
    %44 = arith.subf %43, %13 : vector<16x256xf32>
    %45 = arith.mulf %44, %44 : vector<16x256xf32>
    %cst_17 = arith.constant -3.000000e+02 : f32
    %46 = vector.broadcast %cst_17 : f32 to vector<16x256xf32>
    %47 = arith.mulf %46, %45 : vector<16x256xf32>
    %48 = math.exp %47 : vector<16x256xf32>
    %49 = arith.mulf %48, %44 : vector<16x256xf32>
    %50 = arith.addf %41, %49 : vector<16x256xf32>
    %51 = vector.extract_strided_slice %11 {offsets = [4, 0], sizes = [1, 256], strides = [1, 1]} : vector<8x256xf32> to vector<1x256xf32>
    %52 = vector.broadcast %51 : vector<1x256xf32> to vector<16x256xf32>
    %53 = arith.subf %52, %13 : vector<16x256xf32>
    %54 = arith.mulf %53, %53 : vector<16x256xf32>
    %cst_18 = arith.constant -3.000000e+02 : f32
    %55 = vector.broadcast %cst_18 : f32 to vector<16x256xf32>
    %56 = arith.mulf %55, %54 : vector<16x256xf32>
    %57 = math.exp %56 : vector<16x256xf32>
    %58 = arith.mulf %57, %53 : vector<16x256xf32>
    %59 = arith.addf %50, %58 : vector<16x256xf32>
    %60 = vector.extract_strided_slice %11 {offsets = [5, 0], sizes = [1, 256], strides = [1, 1]} : vector<8x256xf32> to vector<1x256xf32>
    %61 = vector.broadcast %60 : vector<1x256xf32> to vector<16x256xf32>
    %62 = arith.subf %61, %13 : vector<16x256xf32>
    %63 = arith.mulf %62, %62 : vector<16x256xf32>
    %cst_19 = arith.constant -3.000000e+02 : f32
    %64 = vector.broadcast %cst_19 : f32 to vector<16x256xf32>
    %65 = arith.mulf %64, %63 : vector<16x256xf32>
    %66 = math.exp %65 : vector<16x256xf32>
    %67 = arith.mulf %66, %62 : vector<16x256xf32>
    %68 = arith.addf %59, %67 : vector<16x256xf32>
    %69 = vector.extract_strided_slice %11 {offsets = [6, 0], sizes = [1, 256], strides = [1, 1]} : vector<8x256xf32> to vector<1x256xf32>
    %70 = vector.broadcast %69 : vector<1x256xf32> to vector<16x256xf32>
    %71 = arith.subf %70, %13 : vector<16x256xf32>
    %72 = arith.mulf %71, %71 : vector<16x256xf32>
    %cst_20 = arith.constant -3.000000e+02 : f32
    %73 = vector.broadcast %cst_20 : f32 to vector<16x256xf32>
    %74 = arith.mulf %73, %72 : vector<16x256xf32>
    %75 = math.exp %74 : vector<16x256xf32>
    %76 = arith.mulf %75, %71 : vector<16x256xf32>
    %77 = arith.addf %68, %76 : vector<16x256xf32>
    %78 = vector.extract_strided_slice %11 {offsets = [7, 0], sizes = [1, 256], strides = [1, 1]} : vector<8x256xf32> to vector<1x256xf32>
    %79 = vector.broadcast %78 : vector<1x256xf32> to vector<16x256xf32>
    %80 = arith.subf %79, %13 : vector<16x256xf32>
    %81 = arith.mulf %80, %80 : vector<16x256xf32>
    %cst_21 = arith.constant -3.000000e+02 : f32
    %82 = vector.broadcast %cst_21 : f32 to vector<16x256xf32>
    %83 = arith.mulf %82, %81 : vector<16x256xf32>
    %84 = math.exp %83 : vector<16x256xf32>
    %85 = arith.mulf %84, %80 : vector<16x256xf32>
    %86 = arith.addf %77, %85 : vector<16x256xf32>
    %87 = arith.addf %13, %86 : vector<16x256xf32>
    %c0_22 = arith.constant 0 : index
    %c0_23 = arith.constant 0 : index
    %c0_24 = arith.constant 0 : index
    %88 = vector.load %arg6[%c0_22, %c0_23, %c0_24] : memref<1x16x256xf32, #tpu.memory_space<vmem>>, vector<1x16x256xf32>
    %89 = vector.shape_cast %88 : vector<1x16x256xf32> to vector<16x256xf32>
    %90 = vector.shape_cast %87 : vector<16x256xf32> to vector<1x16x256xf32>
    tpu.vector_store %arg6[%c0_22, %c0_23, %c0_24], %90 {strides = array<i32>} : memref<1x16x256xf32, #tpu.memory_space<vmem>>, vector<1x16x256xf32>,
    %cst_25 = arith.constant 9.99899959 : f32
    %91 = vector.broadcast %cst_25 : f32 to vector<16x256xf32>
    %92 = arith.mulf %91, %87 : vector<16x256xf32>
    %cst_26 = arith.constant 1.000000e-03 : f32
    %93 = vector.broadcast %cst_26 : f32 to vector<16x256xf32>
    %94 = arith.addf %92, %93 : vector<16x256xf32>
    %95 = vector.extract_strided_slice %94 {offsets = [0, 0], sizes = [1, 256], strides = [1, 1]} : vector<16x256xf32> to vector<1x256xf32>
    %96 = vector.extract_strided_slice %94 {offsets = [2, 0], sizes = [1, 256], strides = [1, 1]} : vector<16x256xf32> to vector<1x256xf32>
    %97 = vector.extract_strided_slice %94 {offsets = [4, 0], sizes = [1, 256], strides = [1, 1]} : vector<16x256xf32> to vector<1x256xf32>
    %98 = vector.extract_strided_slice %94 {offsets = [6, 0], sizes = [1, 256], strides = [1, 1]} : vector<16x256xf32> to vector<1x256xf32>
    %99 = vector.extract_strided_slice %94 {offsets = [8, 0], sizes = [1, 256], strides = [1, 1]} : vector<16x256xf32> to vector<1x256xf32>
    %100 = vector.extract_strided_slice %94 {offsets = [10, 0], sizes = [1, 256], strides = [1, 1]} : vector<16x256xf32> to vector<1x256xf32>
    %101 = vector.extract_strided_slice %94 {offsets = [12, 0], sizes = [1, 256], strides = [1, 1]} : vector<16x256xf32> to vector<1x256xf32>
    %102 = vector.extract_strided_slice %94 {offsets = [14, 0], sizes = [1, 256], strides = [1, 1]} : vector<16x256xf32> to vector<1x256xf32>
    %103 = tpu.concatenate %95, %96, %97, %98, %99, %100, %101, %102 in 0 : vector<1x256xf32>, vector<1x256xf32>, vector<1x256xf32>, vector<1x256xf32>, vector<1x256xf32>, vector<1x256xf32>, vector<1x256xf32>, vector<1x256xf32> -> vector<8x256xf32>
    %104 = vector.extract_strided_slice %94 {offsets = [1, 0], sizes = [1, 256], strides = [1, 1]} : vector<16x256xf32> to vector<1x256xf32>
    %105 = vector.extract_strided_slice %94 {offsets = [3, 0], sizes = [1, 256], strides = [1, 1]} : vector<16x256xf32> to vector<1x256xf32>
    %106 = vector.extract_strided_slice %94 {offsets = [5, 0], sizes = [1, 256], strides = [1, 1]} : vector<16x256xf32> to vector<1x256xf32>
    %107 = vector.extract_strided_slice %94 {offsets = [7, 0], sizes = [1, 256], strides = [1, 1]} : vector<16x256xf32> to vector<1x256xf32>
    %108 = vector.extract_strided_slice %94 {offsets = [9, 0], sizes = [1, 256], strides = [1, 1]} : vector<16x256xf32> to vector<1x256xf32>
    %109 = vector.extract_strided_slice %94 {offsets = [11, 0], sizes = [1, 256], strides = [1, 1]} : vector<16x256xf32> to vector<1x256xf32>
    %110 = vector.extract_strided_slice %94 {offsets = [13, 0], sizes = [1, 256], strides = [1, 1]} : vector<16x256xf32> to vector<1x256xf32>
    %111 = vector.extract_strided_slice %94 {offsets = [15, 0], sizes = [1, 256], strides = [1, 1]} : vector<16x256xf32> to vector<1x256xf32>
    %112 = tpu.concatenate %104, %105, %106, %107, %108, %109, %110, %111 in 0 : vector<1x256xf32>, vector<1x256xf32>, vector<1x256xf32>, vector<1x256xf32>, vector<1x256xf32>, vector<1x256xf32>, vector<1x256xf32>, vector<1x256xf32> -> vector<8x256xf32>
    %113 = arith.minimumf %103, %112 : vector<8x256xf32>
    %114 = arith.maximumf %103, %112 : vector<8x256xf32>
    %115 = vector.extract_strided_slice %114 {offsets = [0, 0], sizes = [7, 256], strides = [1, 1]} : vector<8x256xf32> to vector<7x256xf32>
    %116 = vector.extract_strided_slice %113 {offsets = [1, 0], sizes = [7, 256], strides = [1, 1]} : vector<8x256xf32> to vector<7x256xf32>
    %117 = arith.minimumf %115, %116 : vector<7x256xf32>
    %118 = arith.maximumf %115, %116 : vector<7x256xf32>
    %119 = vector.extract_strided_slice %114 {offsets = [7, 0], sizes = [1, 256], strides = [1, 1]} : vector<8x256xf32> to vector<1x256xf32>
    %120 = tpu.concatenate %117, %119 in 0 : vector<7x256xf32>, vector<1x256xf32> -> vector<8x256xf32>
    %121 = vector.extract_strided_slice %113 {offsets = [0, 0], sizes = [1, 256], strides = [1, 1]} : vector<8x256xf32> to vector<1x256xf32>
    %122 = tpu.concatenate %121, %118 in 0 : vector<1x256xf32>, vector<7x256xf32> -> vector<8x256xf32>
    %123 = arith.minimumf %122, %120 : vector<8x256xf32>
    %124 = arith.maximumf %122, %120 : vector<8x256xf32>
    %125 = vector.extract_strided_slice %124 {offsets = [0, 0], sizes = [7, 256], strides = [1, 1]} : vector<8x256xf32> to vector<7x256xf32>
    %126 = vector.extract_strided_slice %123 {offsets = [1, 0], sizes = [7, 256], strides = [1, 1]} : vector<8x256xf32> to vector<7x256xf32>
    %127 = arith.minimumf %125, %126 : vector<7x256xf32>
    %128 = arith.maximumf %125, %126 : vector<7x256xf32>
    %129 = vector.extract_strided_slice %124 {offsets = [7, 0], sizes = [1, 256], strides = [1, 1]} : vector<8x256xf32> to vector<1x256xf32>
    %130 = tpu.concatenate %127, %129 in 0 : vector<7x256xf32>, vector<1x256xf32> -> vector<8x256xf32>
    %131 = vector.extract_strided_slice %123 {offsets = [0, 0], sizes = [1, 256], strides = [1, 1]} : vector<8x256xf32> to vector<1x256xf32>
    %132 = tpu.concatenate %131, %128 in 0 : vector<1x256xf32>, vector<7x256xf32> -> vector<8x256xf32>
    %133 = arith.minimumf %132, %130 : vector<8x256xf32>
    %134 = arith.maximumf %132, %130 : vector<8x256xf32>
    %135 = vector.extract_strided_slice %134 {offsets = [0, 0], sizes = [7, 256], strides = [1, 1]} : vector<8x256xf32> to vector<7x256xf32>
    %136 = vector.extract_strided_slice %133 {offsets = [1, 0], sizes = [7, 256], strides = [1, 1]} : vector<8x256xf32> to vector<7x256xf32>
    %137 = arith.minimumf %135, %136 : vector<7x256xf32>
    %138 = arith.maximumf %135, %136 : vector<7x256xf32>
    %139 = vector.extract_strided_slice %134 {offsets = [7, 0], sizes = [1, 256], strides = [1, 1]} : vector<8x256xf32> to vector<1x256xf32>
    %140 = tpu.concatenate %137, %139 in 0 : vector<7x256xf32>, vector<1x256xf32> -> vector<8x256xf32>
    %141 = vector.extract_strided_slice %133 {offsets = [0, 0], sizes = [1, 256], strides = [1, 1]} : vector<8x256xf32> to vector<1x256xf32>
    %142 = tpu.concatenate %141, %138 in 0 : vector<1x256xf32>, vector<7x256xf32> -> vector<8x256xf32>
    %143 = arith.minimumf %142, %140 : vector<8x256xf32>
    %144 = arith.maximumf %142, %140 : vector<8x256xf32>
    %145 = vector.extract_strided_slice %144 {offsets = [0, 0], sizes = [7, 256], strides = [1, 1]} : vector<8x256xf32> to vector<7x256xf32>
    %146 = vector.extract_strided_slice %143 {offsets = [1, 0], sizes = [7, 256], strides = [1, 1]} : vector<8x256xf32> to vector<7x256xf32>
    %147 = arith.minimumf %145, %146 : vector<7x256xf32>
    %148 = arith.maximumf %145, %146 : vector<7x256xf32>
    %149 = vector.extract_strided_slice %144 {offsets = [7, 0], sizes = [1, 256], strides = [1, 1]} : vector<8x256xf32> to vector<1x256xf32>
    %150 = tpu.concatenate %147, %149 in 0 : vector<7x256xf32>, vector<1x256xf32> -> vector<8x256xf32>
    %151 = vector.extract_strided_slice %143 {offsets = [0, 0], sizes = [1, 256], strides = [1, 1]} : vector<8x256xf32> to vector<1x256xf32>
    %152 = tpu.concatenate %151, %148 in 0 : vector<1x256xf32>, vector<7x256xf32> -> vector<8x256xf32>
    %153 = arith.minimumf %152, %150 : vector<8x256xf32>
    %154 = arith.maximumf %152, %150 : vector<8x256xf32>
    %155 = vector.extract_strided_slice %154 {offsets = [0, 0], sizes = [7, 256], strides = [1, 1]} : vector<8x256xf32> to vector<7x256xf32>
    %156 = vector.extract_strided_slice %153 {offsets = [1, 0], sizes = [7, 256], strides = [1, 1]} : vector<8x256xf32> to vector<7x256xf32>
    %157 = arith.minimumf %155, %156 : vector<7x256xf32>
    %158 = arith.maximumf %155, %156 : vector<7x256xf32>
    %159 = vector.extract_strided_slice %154 {offsets = [7, 0], sizes = [1, 256], strides = [1, 1]} : vector<8x256xf32> to vector<1x256xf32>
    %160 = tpu.concatenate %157, %159 in 0 : vector<7x256xf32>, vector<1x256xf32> -> vector<8x256xf32>
    %161 = vector.extract_strided_slice %153 {offsets = [0, 0], sizes = [1, 256], strides = [1, 1]} : vector<8x256xf32> to vector<1x256xf32>
    %162 = tpu.concatenate %161, %158 in 0 : vector<1x256xf32>, vector<7x256xf32> -> vector<8x256xf32>
    %163 = arith.minimumf %162, %160 : vector<8x256xf32>
    %164 = arith.maximumf %162, %160 : vector<8x256xf32>
    %165 = vector.extract_strided_slice %164 {offsets = [0, 0], sizes = [7, 256], strides = [1, 1]} : vector<8x256xf32> to vector<7x256xf32>
    %166 = vector.extract_strided_slice %163 {offsets = [1, 0], sizes = [7, 256], strides = [1, 1]} : vector<8x256xf32> to vector<7x256xf32>
    %167 = arith.minimumf %165, %166 : vector<7x256xf32>
    %168 = arith.maximumf %165, %166 : vector<7x256xf32>
    %169 = vector.extract_strided_slice %164 {offsets = [7, 0], sizes = [1, 256], strides = [1, 1]} : vector<8x256xf32> to vector<1x256xf32>
    %170 = tpu.concatenate %167, %169 in 0 : vector<7x256xf32>, vector<1x256xf32> -> vector<8x256xf32>
    %171 = vector.extract_strided_slice %163 {offsets = [0, 0], sizes = [1, 256], strides = [1, 1]} : vector<8x256xf32> to vector<1x256xf32>
    %172 = tpu.concatenate %171, %168 in 0 : vector<1x256xf32>, vector<7x256xf32> -> vector<8x256xf32>
    %173 = arith.minimumf %172, %170 : vector<8x256xf32>
    %174 = arith.maximumf %172, %170 : vector<8x256xf32>
    %175 = vector.extract_strided_slice %174 {offsets = [0, 0], sizes = [7, 256], strides = [1, 1]} : vector<8x256xf32> to vector<7x256xf32>
    %176 = vector.extract_strided_slice %173 {offsets = [1, 0], sizes = [7, 256], strides = [1, 1]} : vector<8x256xf32> to vector<7x256xf32>
    %177 = arith.minimumf %175, %176 : vector<7x256xf32>
    %178 = arith.maximumf %175, %176 : vector<7x256xf32>
    %179 = vector.extract_strided_slice %174 {offsets = [7, 0], sizes = [1, 256], strides = [1, 1]} : vector<8x256xf32> to vector<1x256xf32>
    %180 = tpu.concatenate %177, %179 in 0 : vector<7x256xf32>, vector<1x256xf32> -> vector<8x256xf32>
    %181 = vector.extract_strided_slice %173 {offsets = [0, 0], sizes = [1, 256], strides = [1, 1]} : vector<8x256xf32> to vector<1x256xf32>
    %182 = tpu.concatenate %181, %178 in 0 : vector<1x256xf32>, vector<7x256xf32> -> vector<8x256xf32>
    %183 = arith.minimumf %182, %180 : vector<8x256xf32>
    %184 = arith.maximumf %182, %180 : vector<8x256xf32>
    %185 = vector.extract_strided_slice %184 {offsets = [0, 0], sizes = [7, 256], strides = [1, 1]} : vector<8x256xf32> to vector<7x256xf32>
    %186 = vector.extract_strided_slice %183 {offsets = [1, 0], sizes = [7, 256], strides = [1, 1]} : vector<8x256xf32> to vector<7x256xf32>
    %187 = arith.minimumf %185, %186 : vector<7x256xf32>
    %188 = arith.maximumf %185, %186 : vector<7x256xf32>
    %189 = vector.extract_strided_slice %184 {offsets = [7, 0], sizes = [1, 256], strides = [1, 1]} : vector<8x256xf32> to vector<1x256xf32>
    %190 = tpu.concatenate %187, %189 in 0 : vector<7x256xf32>, vector<1x256xf32> -> vector<8x256xf32>
    %191 = vector.extract_strided_slice %183 {offsets = [0, 0], sizes = [1, 256], strides = [1, 1]} : vector<8x256xf32> to vector<1x256xf32>
    %192 = tpu.concatenate %191, %188 in 0 : vector<1x256xf32>, vector<7x256xf32> -> vector<8x256xf32>
    %193 = vector.extract_strided_slice %192 {offsets = [0, 0], sizes = [1, 256], strides = [1, 1]} : vector<8x256xf32> to vector<1x256xf32>
    %194 = vector.extract_strided_slice %190 {offsets = [0, 0], sizes = [1, 256], strides = [1, 1]} : vector<8x256xf32> to vector<1x256xf32>
    %195 = vector.extract_strided_slice %192 {offsets = [1, 0], sizes = [1, 256], strides = [1, 1]} : vector<8x256xf32> to vector<1x256xf32>
    %196 = vector.extract_strided_slice %190 {offsets = [1, 0], sizes = [1, 256], strides = [1, 1]} : vector<8x256xf32> to vector<1x256xf32>
    %197 = vector.extract_strided_slice %192 {offsets = [2, 0], sizes = [1, 256], strides = [1, 1]} : vector<8x256xf32> to vector<1x256xf32>
    %198 = vector.extract_strided_slice %190 {offsets = [2, 0], sizes = [1, 256], strides = [1, 1]} : vector<8x256xf32> to vector<1x256xf32>
    %199 = vector.extract_strided_slice %192 {offsets = [3, 0], sizes = [1, 256], strides = [1, 1]} : vector<8x256xf32> to vector<1x256xf32>
    %200 = vector.extract_strided_slice %190 {offsets = [3, 0], sizes = [1, 256], strides = [1, 1]} : vector<8x256xf32> to vector<1x256xf32>
    %201 = vector.extract_strided_slice %192 {offsets = [4, 0], sizes = [1, 256], strides = [1, 1]} : vector<8x256xf32> to vector<1x256xf32>
    %202 = vector.extract_strided_slice %190 {offsets = [4, 0], sizes = [1, 256], strides = [1, 1]} : vector<8x256xf32> to vector<1x256xf32>
    %203 = vector.extract_strided_slice %192 {offsets = [5, 0], sizes = [1, 256], strides = [1, 1]} : vector<8x256xf32> to vector<1x256xf32>
    %204 = vector.extract_strided_slice %190 {offsets = [5, 0], sizes = [1, 256], strides = [1, 1]} : vector<8x256xf32> to vector<1x256xf32>
    %205 = vector.extract_strided_slice %192 {offsets = [6, 0], sizes = [1, 256], strides = [1, 1]} : vector<8x256xf32> to vector<1x256xf32>
    %206 = vector.extract_strided_slice %190 {offsets = [6, 0], sizes = [1, 256], strides = [1, 1]} : vector<8x256xf32> to vector<1x256xf32>
    %207 = vector.extract_strided_slice %192 {offsets = [7, 0], sizes = [1, 256], strides = [1, 1]} : vector<8x256xf32> to vector<1x256xf32>
    %208 = vector.extract_strided_slice %190 {offsets = [7, 0], sizes = [1, 256], strides = [1, 1]} : vector<8x256xf32> to vector<1x256xf32>
    %209 = tpu.concatenate %193, %194, %195, %196, %197, %198, %199, %200, %201, %202, %203, %204, %205, %206, %207, %208 in 0 : vector<1x256xf32>, vector<1x256xf32>, vector<1x256xf32>, vector<1x256xf32>, vector<1x256xf32>, vector<1x256xf32>, vector<1x256xf32>, vector<1x256xf32>, vector<1x256xf32>, vector<1x256xf32>, vector<1x256xf32>, vector<1x256xf32>, vector<1x256xf32>, vector<1x256xf32>, vector<1x256xf32>, vector<1x256xf32> -> vector<16x256xf32>
    %cst_27 = arith.constant 1.000000e-03 : f32
    %cst_28 = arith.constant 1.000000e+01 : f32
    %210 = vector.broadcast %cst_27 : f32 to vector<16x256xf32>
    %211 = arith.maximumf %210, %209 : vector<16x256xf32>
    %212 = vector.broadcast %cst_28 : f32 to vector<16x256xf32>
    %213 = arith.minimumf %212, %211 : vector<16x256xf32>
    %c0_29 = arith.constant 0 : index
    %c0_30 = arith.constant 0 : index
    %c0_31 = arith.constant 0 : index
    %214 = vector.load %arg7[%c0_29, %c0_30, %c0_31] : memref<1x16x256xf32, #tpu.memory_space<vmem>>, vector<1x16x256xf32>
    %215 = vector.shape_cast %214 : vector<1x16x256xf32> to vector<16x256xf32>
    %216 = vector.shape_cast %213 : vector<16x256xf32> to vector<1x16x256xf32>
    tpu.vector_store %arg7[%c0_29, %c0_30, %c0_31], %216 {strides = array<i32>} : memref<1x16x256xf32, #tpu.memory_space<vmem>>, vector<1x16x256xf32>,
    return
  }
  func.func @transform_0(%arg0: i32, %arg1: i32) -> (i32, i32, i32) {
    %c0_i32 = arith.constant 0 : i32
    %c0_i32_0 = arith.constant 0 : i32
    return %arg0, %c0_i32, %arg1 : i32, i32, i32
  }
  func.func @transform_1(%arg0: i32, %arg1: i32) -> (i32, i32, i32) {
    %c0_i32 = arith.constant 0 : i32
    %c0_i32_0 = arith.constant 0 : i32
    return %arg0, %c0_i32, %arg1 : i32, i32, i32
  }
  func.func @transform_2(%arg0: i32, %arg1: i32) -> (i32, i32) {
    %c0_i32 = arith.constant 0 : i32
    %c0_i32_0 = arith.constant 0 : i32
    %c0_i32_1 = arith.constant 0 : i32
    return %c0_i32, %c0_i32_0 : i32, i32
  }
  func.func @transform_3(%arg0: i32, %arg1: i32) -> (i32, i32) {
    %c0_i32 = arith.constant 0 : i32
    %c0_i32_0 = arith.constant 0 : i32
    %c0_i32_1 = arith.constant 0 : i32
    return %c0_i32, %c0_i32_0 : i32, i32
  }
  func.func @transform_4(%arg0: i32, %arg1: i32) -> (i32, i32, i32) {
    %c0_i32 = arith.constant 0 : i32
    %c0_i32_0 = arith.constant 0 : i32
    return %arg0, %c0_i32, %arg1 : i32, i32, i32
  }
  func.func @transform_5(%arg0: i32, %arg1: i32) -> (i32, i32, i32) {
    %c0_i32 = arith.constant 0 : i32
    %c0_i32_0 = arith.constant 0 : i32
    return %arg0, %c0_i32, %arg1 : i32, i32, i32
  }
}

</mosaic_0001>

<llo_original>
// kernel: tpu_custom_call.1
$region0: #{tpu_custom_call.1}
  #allocation0 [shape = 'u32[]', space=smem, size = 0x4, offset = 0x4, fixed_abs, tag = 'smem constant byte address 0x4 - core index']
  #allocation1 [shape = 'u32[72,128]{1,0:T(1,128)}', space=vmem, size = 0x9000, scoped, tag = 'internal scratch']
  %s0 = inlined_call_operand.vmem [shape: f32[2,9,256], index: 0, kind: input, shape index: {}]
  %s1 = inlined_call_operand.vmem [shape: f32[2,16,256], index: 1, kind: input, shape index: {}]
  %s2 = inlined_call_operand.vmem [shape: f32[33,9], index: 2, kind: input, shape index: {}]
  %s3 = inlined_call_operand.vmem [shape: f32[8,33], index: 3, kind: input, shape index: {}]
  %s4 = inlined_call_operand.hbm [shape: f32[2,16,256], index: 4, kind: output, shape index: {0}]
  %s5 = inlined_call_operand.hbm [shape: f32[2,16,256], index: 5, kind: output, shape index: {1}]
  %6 = xla_tuple %s4, %s5
  %s7 = sld [smem:[#allocation0]]
  $region57: #{tpu_custom_call.1} parent=0
    _
  %s9 = ssub.s32 1, %s7
  %s10 = scalar_select 0, %s9, %s7
  $region1: #{tpu_custom_call.1} parent=0
    #allocation2 [shape = 'u8[32768]{0}', space=vmem, size = 0x8000, scoped, tag = 'output window, operand 0']
    #allocation3 [shape = 's32[2]{0}', space=sflag, size = 0x8, scoped, tag = 'scoped memory for tpu_custom_call.1']
    #allocation4 [shape = 'u8[32768]{0}', space=vmem, size = 0x8000, scoped, tag = 'output window, operand 1']
    #allocation5 [shape = 's32[2]{0}', space=sflag, size = 0x8, scoped, tag = 'scoped memory for tpu_custom_call.1']
    %11 = vsyncpa [#allocation3], 0
    %s12 = scalar_lea.sflag [#allocation3], 1
    %13 = vsyncpa %s12, 0
    %14 = vsyncpa [#allocation5], 0
    %s15 = scalar_lea.sflag [#allocation5], 1
    %16 = vsyncpa %s15, 0
    loop: start=0, step=1, limit=4
    $region2: #{tpu_custom_call.1} parent=1 // loop_pre_header
      _
    $region3: #{tpu_custom_call.1} parent=1 // loop_header
      %s18 = sphi 0, %s22
      %p19 = scmp.ge.s32.totalorder %s18, 4
      %s25 = sphi 0, %s37
      %s26 = sphi 0, %s33
      %s27 = sphi 0, %s25
      %s28 = sphi 0, %s26
      %s29 = sphi 0, %s27
      %s30 = sphi 0, %s28
      %s42 = sphi 0, %s44
      %s45 = sphi 0, %s42
      %s46 = sphi 0, %s45
      %s62 = sphi 0, %s46
      %s70 = sphi 0, %s72
      %s73 = sphi 0, %s70
      %s74 = sphi 0, %s73
      %s90 = sphi 0, %s74
      %s94 = sphi 0, %s94
      %s96 = sphi 0, %s94
      %s97 = sphi 0, %s96
      %s111 = sphi 0, %s97
      %s115 = sphi 0, %s115
      %s117 = sphi 0, %s115
      %s118 = sphi 0, %s117
      %s132 = sphi 0, %s118
      %s140 = sphi 0, %s142
      %s143 = sphi 0, %s140
      %s144 = sphi 0, %s143
      %s160 = sphi 0, %s144
      %s168 = sphi 0, %s170
      %s171 = sphi 0, %s168
      %s172 = sphi 0, %s171
      %s188 = sphi 0, %s172
    $region4: #{tpu_custom_call.1} parent=1 // loop_header_branch
      %21 = sbr.rel (%p19) target = $region8
    $region5: #{tpu_custom_call.1} parent=1 // loop_body
      %s23 = ssub.s32 %s18, 1
      %s24 = ssub.s32 %s18, 2
      %s31 = sadd.s32 1, %s26
      %p32 = scmp.ge.s32.totalorder %s31, 1
      %s33 = scalar_select %p32, 0, %s31
      %s34 = sadd.s32 1, %s25
      %s35 = scalar_select %p32, %s34, %s25
      %p36 = scmp.ge.s32.totalorder %s35, 2
      %s37 = scalar_select %p36, 0, %s35
      %s38 = ssub.s32 %s25, %s37
      %s39 = ssub.s32 %s26, %s33
      %s40 = sor.u32 %s38, %s39
      %p41 = scmp.eq.s32.totalorder %s40, 0
      %s43 = sadd.s32 %s42, 1
      %s44 = scalar_select %p41, %s42, %s43
      %p47 = pneg %p41
      %p48 = scmp.eq.s32.totalorder %s18, 1
      %p49 = por %p47, %p48
      %p50 = scmp.ne.s32.totalorder %s42, %s45
      %p51 = scmp.eq.s32.totalorder %s18, 0
      %p52 = por %p50, %p51
      %p53 = scmp.ne.s32.totalorder %s42, %s45
      %p54 = scmp.eq.s32.totalorder %s23, 1
      %p55 = por %p53, %p54
      %p56 = scmp.ne.s32.totalorder %s45, %s46
      %p57 = scmp.eq.s32.totalorder %s23, 0
      %p58 = por %p56, %p57
      %p59 = scmp.ne.s32.totalorder %s45, %s46
      %p60 = scmp.eq.s32.totalorder %s24, 1
      %p61 = por %p59, %p60
      %p63 = scmp.ne.s32.totalorder %s46, %s62
      %p64 = scmp.eq.s32.totalorder %s24, 0
      %p65 = por %p63, %p64
      %s66 = ssub.s32 %s25, %s37
      %s67 = ssub.s32 %s26, %s33
      %s68 = sor.u32 %s66, %s67
      %p69 = scmp.eq.s32.totalorder %s68, 0
      %s71 = sadd.s32 %s70, 1
      %s72 = scalar_select %p69, %s70, %s71
      %p75 = pneg %p69
      %p76 = scmp.eq.s32.totalorder %s18, 1
      %p77 = por %p75, %p76
      %p78 = scmp.ne.s32.totalorder %s70, %s73
      %p79 = scmp.eq.s32.totalorder %s18, 0
      %p80 = por %p78, %p79
      %p81 = scmp.ne.s32.totalorder %s70, %s73
      %p82 = scmp.eq.s32.totalorder %s23, 1
      %p83 = por %p81, %p82
      %p84 = scmp.ne.s32.totalorder %s73, %s74
      %p85 = scmp.eq.s32.totalorder %s23, 0
      %p86 = por %p84, %p85
      %p87 = scmp.ne.s32.totalorder %s73, %s74
      %p88 = scmp.eq.s32.totalorder %s24, 1
      %p89 = por %p87, %p88
      %p91 = scmp.ne.s32.totalorder %s74, %s90
      %p92 = scmp.eq.s32.totalorder %s24, 0
      %p93 = por %p91, %p92
      %s95 = sadd.s32 %s94, 1
      %p98 = scmp.eq.s32.totalorder %s18, 1
      %p99 = scmp.ne.s32.totalorder %s94, %s96
      %p100 = scmp.eq.s32.totalorder %s18, 0
      %p101 = por %p99, %p100
      %p102 = scmp.ne.s32.totalorder %s94, %s96
      %p103 = scmp.eq.s32.totalorder %s23, 1
      %p104 = por %p102, %p103
      %p105 = scmp.ne.s32.totalorder %s96, %s97
      %p106 = scmp.eq.s32.totalorder %s23, 0
      %p107 = por %p105, %p106
      %p108 = scmp.ne.s32.totalorder %s96, %s97
      %p109 = scmp.eq.s32.totalorder %s24, 1
      %p110 = por %p108, %p109
      %p112 = scmp.ne.s32.totalorder %s97, %s111
      %p113 = scmp.eq.s32.totalorder %s24, 0
      %p114 = por %p112, %p113
      %s116 = sadd.s32 %s115, 1
      %p119 = scmp.eq.s32.totalorder %s18, 1
      %p120 = scmp.ne.s32.totalorder %s115, %s117
      %p121 = scmp.eq.s32.totalorder %s18, 0
      %p122 = por %p120, %p121
      %p123 = scmp.ne.s32.totalorder %s115, %s117
      %p124 = scmp.eq.s32.totalorder %s23, 1
      %p125 = por %p123, %p124
      %p126 = scmp.ne.s32.totalorder %s117, %s118
      %p127 = scmp.eq.s32.totalorder %s23, 0
      %p128 = por %p126, %p127
      %p129 = scmp.ne.s32.totalorder %s117, %s118
      %p130 = scmp.eq.s32.totalorder %s24, 1
      %p131 = por %p129, %p130
      %p133 = scmp.ne.s32.totalorder %s118, %s132
      %p134 = scmp.eq.s32.totalorder %s24, 0
      %p135 = por %p133, %p134
      %s136 = ssub.s32 %s25, %s37
      %s137 = ssub.s32 %s26, %s33
      %s138 = sor.u32 %s136, %s137
      %p139 = scmp.eq.s32.totalorder %s138, 0
      %s141 = sadd.s32 %s140, 1
      %s142 = scalar_select %p139, %s140, %s141
      %p145 = pneg %p139
      %p146 = scmp.eq.s32.totalorder %s18, 1
      %p147 = por %p145, %p146
      %p148 = scmp.ne.s32.totalorder %s140, %s143
      %p149 = scmp.eq.s32.totalorder %s18, 0
      %p150 = por %p148, %p149
      %p151 = scmp.ne.s32.totalorder %s140, %s143
      %p152 = scmp.eq.s32.totalorder %s23, 1
      %p153 = por %p151, %p152
      %p154 = scmp.ne.s32.totalorder %s143, %s144
      %p155 = scmp.eq.s32.totalorder %s23, 0
      %p156 = por %p154, %p155
      %p157 = scmp.ne.s32.totalorder %s143, %s144
      %p158 = scmp.eq.s32.totalorder %s24, 1
      %p159 = por %p157, %p158
      %p161 = scmp.ne.s32.totalorder %s144, %s160
      %p162 = scmp.eq.s32.totalorder %s24, 0
      %p163 = por %p161, %p162
      %s164 = ssub.s32 %s25, %s37
      %s165 = ssub.s32 %s26, %s33
      %s166 = sor.u32 %s164, %s165
      %p167 = scmp.eq.s32.totalorder %s166, 0
      %s169 = sadd.s32 %s168, 1
      %s170 = scalar_select %p167, %s168, %s169
      %p173 = pneg %p167
      %p174 = scmp.eq.s32.totalorder %s18, 1
      %p175 = por %p173, %p174
      %p176 = scmp.ne.s32.totalorder %s168, %s171
      %p177 = scmp.eq.s32.totalorder %s18, 0
      %p178 = por %p176, %p177
      %p179 = scmp.ne.s32.totalorder %s168, %s171
      %p180 = scmp.eq.s32.totalorder %s23, 1
      %p181 = por %p179, %p180
      %p182 = scmp.ne.s32.totalorder %s171, %s172
      %p183 = scmp.eq.s32.totalorder %s23, 0
      %p184 = por %p182, %p183
      %p185 = scmp.ne.s32.totalorder %s171, %s172
      %p186 = scmp.eq.s32.totalorder %s24, 1
      %p187 = por %p185, %p186
      %p189 = scmp.ne.s32.totalorder %s172, %s188
      %p190 = scmp.eq.s32.totalorder %s24, 0
      %p191 = por %p189, %p190
      %p192 = scmp.le.s32.totalorder 1, %s18
      %p193 = scmp.lt.s32.totalorder %s18, 3
      %p194 = pnand %p192, %p193
      %p195 = pneg %p194
      // Predicated region
      $region9: #{tpu_custom_call.1} parent=5 // pred_check
        _
      $region10: #{tpu_custom_call.1} parent=5 // pred_check_branch
        %197 = sbr.rel (%p194) target = $region12
      $region11: #{tpu_custom_call.1} parent=5 // pred_region
        %s198 = ssub.s32 %s18, 1
        // Predicated region
        $region13: #{tpu_custom_call.1} parent=11 // pred_check
          %p199 = pneg %p107
        $region14: #{tpu_custom_call.1} parent=11 // pred_check_branch
          %201 = sbr.rel (%p199) target = $region16
        $region15: #{tpu_custom_call.1} parent=11 // pred_region
          _
        $region16: #{tpu_custom_call.1} parent=11 // pred_fallthru
          _
        // Predicated region
        $region17: #{tpu_custom_call.1} parent=11 // pred_check
          %p202 = pneg %p128
        $region18: #{tpu_custom_call.1} parent=11 // pred_check_branch
          %204 = sbr.rel (%p202) target = $region20
        $region19: #{tpu_custom_call.1} parent=11 // pred_region
          _
        $region20: #{tpu_custom_call.1} parent=11 // pred_fallthru
          _
      $region12: #{tpu_custom_call.1} parent=5 // pred_fallthru
        _
      %p205 = scmp.lt.s32.totalorder %s18, 2
      // Predicated region
      $region21: #{tpu_custom_call.1} parent=5 // pred_check
        %p206 = pneg %p205
      $region22: #{tpu_custom_call.1} parent=5 // pred_check_branch
        %208 = sbr.rel (%p206) target = $region24
      $region23: #{tpu_custom_call.1} parent=5 // pred_region
        // Predicated region
        $region25: #{tpu_custom_call.1} parent=23 // pred_check
          %p209 = pneg %p52
        $region26: #{tpu_custom_call.1} parent=23 // pred_check_branch
          %211 = sbr.rel (%p209) target = $region28
        $region27: #{tpu_custom_call.1} parent=23 // pred_region
          %s212 = smul.u32 2, %s26
          %p213 = scmp.lt.s32.totalorder %s25, 1
          %s214 = scalar_select %p213, %s25, 1
          %p215 = scmp.lt.s32.totalorder %s212, 1
          %s216 = scalar_select %p215, %s212, 1
          %s217 = smul.addr %s214, 4
          %s218 = sadd.s32 %s216, %s217
          %s219 = smul.addr %s218, 8
          %s220 = scalar_lea.vmem %s0, %s219
          %s221 = smul.u32 2, %s26
        $region28: #{tpu_custom_call.1} parent=23 // pred_fallthru
          _
        // Predicated region
        $region29: #{tpu_custom_call.1} parent=23 // pred_check
          %p222 = pneg %p80
        $region30: #{tpu_custom_call.1} parent=23 // pred_check_branch
          %224 = sbr.rel (%p222) target = $region32
        $region31: #{tpu_custom_call.1} parent=23 // pred_region
          %s225 = smul.u32 2, %s26
          %p226 = scmp.lt.s32.totalorder %s25, 1
          %s227 = scalar_select %p226, %s25, 1
          %p228 = scmp.lt.s32.totalorder %s225, 1
          %s229 = scalar_select %p228, %s225, 1
          %s230 = smul.addr %s227, 4
          %s231 = sadd.s32 %s229, %s230
          %s232 = smul.addr %s231, 8
          %s233 = scalar_lea.vmem %s1, %s232
          %s234 = smul.u32 2, %s26
        $region32: #{tpu_custom_call.1} parent=23 // pred_fallthru
          _
      $region24: #{tpu_custom_call.1} parent=5 // pred_fallthru
        _
      %p235 = scmp.le.s32.totalorder 1, %s18
      %p236 = scmp.lt.s32.totalorder %s18, 3
      %p237 = pnand %p235, %p236
      %p238 = pneg %p237
      // Predicated region
      $region33: #{tpu_custom_call.1} parent=5 // pred_check
        _
      $region34: #{tpu_custom_call.1} parent=5 // pred_check_branch
        %240 = sbr.rel (%p237) target = $region36
      $region35: #{tpu_custom_call.1} parent=5 // pred_region
        %s241 = ssub.s32 %s18, 1
        %s242 = smul.u32 2, %s28
        %p243 = scmp.lt.s32.totalorder %s27, 1
        %s244 = scalar_select %p243, %s27, 1
        %p245 = scmp.lt.s32.totalorder %s242, 1
        %s246 = scalar_select %p245, %s242, 1
        %s247 = smul.addr %s244, 4
        %s248 = sadd.s32 %s246, %s247
        %s249 = smul.addr %s248, 8
        %s250 = scalar_lea.vmem %s0, %s249
        %p251 = pneg %p58
        %p252 = pneg %p55
        %s253 = smul.u32 2, %s28
        %p254 = scmp.lt.s32.totalorder %s27, 1
        %s255 = scalar_select %p254, %s27, 1
        %p256 = scmp.lt.s32.totalorder %s253, 1
        %s257 = scalar_select %p256, %s253, 1
        %s258 = smul.addr %s255, 4
        %s259 = sadd.s32 %s257, %s258
        %s260 = smul.addr %s259, 8
        %s261 = scalar_lea.vmem %s1, %s260
        %p262 = pneg %p86
        %p263 = pneg %p83
        %p264 = pneg %p107
        %p265 = pneg %p104
        %p266 = pneg %p128
        %p267 = pneg %p125
        %p268 = pneg %p156
        %p269 = pneg %p153
        %s270 = sand.u32 %s143, 1
        %s271 = scalar_lea.sflag [#allocation3], %s270
        %s272 = sand.u32 %s143, 1
        %s273 = smul.addr %s272, 32
        %s274 = scalar_lea.vmem [#allocation2], %s273
        %p275 = pneg %p184
        %p276 = pneg %p181
        %s277 = sand.u32 %s171, 1
        %s278 = scalar_lea.sflag [#allocation5], %s277
        %s279 = sand.u32 %s171, 1
        %s280 = smul.addr %s279, 32
        %s281 = scalar_lea.vmem [#allocation4], %s280
        %s282 = smul.u32 2, %s28
        %p283 = scmp.lt.s32.totalorder %s27, 1
        %s284 = scalar_select %p283, %s27, 1
        %p285 = scmp.lt.s32.totalorder %s282, 1
        %s286 = scalar_select %p285, %s282, 1
        %s287 = smul.addr %s284, 4
        %s288 = sadd.s32 %s286, %s287
        %s289 = smul.addr %s288, 8
        %s290 = scalar_lea.vmem %s0, %s289
        %s291 = smul.u32 2, %s28
        %s292 = smul.u32 2, %s28
        %p293 = scmp.lt.s32.totalorder %s27, 1
        %s294 = scalar_select %p293, %s27, 1
        %p295 = scmp.lt.s32.totalorder %s292, 1
        %s296 = scalar_select %p295, %s292, 1
        %s297 = smul.addr %s294, 4
        %s298 = sadd.s32 %s296, %s297
        %s299 = smul.addr %s298, 8
        %s300 = scalar_lea.vmem %s1, %s299
        %s301 = smul.u32 2, %s28
        %s302 = smul.u32 2, %s28
        %s303 = smul.u32 2, %s28
        %v304 = vld [vmem:[%s290] sm:$0xff]
        %v305 = vld [vmem:[%s290 + $0x8] sm:$0xff]
        %v306 = vld [vmem:[%s290 + $0x10] sm:$0x1]
        %v307 = vld [vmem:[%s290 + $0x18] sm:$0x1]
        %v308 = vld [vmem:[%s2] sm:$0xff]
        %v309 = vld [vmem:[%s2 + $0x8] sm:$0xff]
        %v310 = vld [vmem:[%s2 + $0x10] sm:$0xff]
        %v311 = vld [vmem:[%s2 + $0x18] sm:$0xff]
        %v312 = vld [vmem:[%s2 + $0x20] sm:$0x1]
        %vm313 = vcmask 72704
        %v315 = vsel %vm313, %v308, 0
        %v318 = vsel %vm313, %v309, 0
        %v321 = vsel %vm313, %v310, 0
        %v324 = vsel %vm313, %v311, 0
        %v327 = vsel %vm313, %v312, 0
        %vm329 = vcmask 1040384
        %v331 = vsel %vm329, %v306, 0
        %v334 = vsel %vm329, %v307, 0
        %336 = vmatpush.msra.mxu0 0.0
        %337 = vmatpush.msra.mxu0 0.0
        %338 = vmatpush.msra.mxu0 0.0
        %339 = vmatpush.msra.mxu0 0.0
        %340 = vmatpush.msra.mxu0 0.0
        %341 = vmatpush.msra.mxu0 0.0
        %342 = vmatpush.msra.mxu0 0.0
        %343 = vmatpush.msra.mxu0 0.0
        %344 = vmatpush.msra.mxu0 0.0
        %345 = vmatpush.msra.mxu0 0.0
        %346 = vmatpush.msra.mxu0 0.0
        %347 = vmatpush.msra.mxu0 0.0
        %348 = vmatpush.msra.mxu0 0.0
        %349 = vmatpush.msra.mxu0 0.0
        %350 = vmatpush.msra.mxu0 %v331
        %351 = vmatpush.msra.mxu0 %v304
        %352 = vmatmul.f32.gmra.mxu0 %v315
        %v353 = vpop.f32.mrf.mxu0
        %v354 = vadd.f32 0.0, %v353
        %355 = vmatmul.f32.gmra.mxu0 %v318
        %v356 = vpop.f32.mrf.mxu0
        %v357 = vadd.f32 0.0, %v356
        %358 = vmatmul.f32.gmra.mxu0 %v321
        %v359 = vpop.f32.mrf.mxu0
        %v360 = vadd.f32 0.0, %v359
        %361 = vmatmul.f32.gmra.mxu0 %v324
        %v362 = vpop.f32.mrf.mxu0
        %v363 = vadd.f32 0.0, %v362
        %364 = vmatmul.f32.gmra.mxu0 %v327
        %v365 = vpop.f32.mrf.mxu0
        %v366 = vadd.f32 0.0, %v365
        %367 = vdwg.mxu0
        %368 = vmatpush.msra.mxu0 0.0
        %369 = vmatpush.msra.mxu0 0.0
        %370 = vmatpush.msra.mxu0 0.0
        %371 = vmatpush.msra.mxu0 0.0
        %372 = vmatpush.msra.mxu0 0.0
        %373 = vmatpush.msra.mxu0 0.0
        %374 = vmatpush.msra.mxu0 0.0
        %375 = vmatpush.msra.mxu0 0.0
        %376 = vmatpush.msra.mxu0 0.0
        %377 = vmatpush.msra.mxu0 0.0
        %378 = vmatpush.msra.mxu0 0.0
        %379 = vmatpush.msra.mxu0 0.0
        %380 = vmatpush.msra.mxu0 0.0
        %381 = vmatpush.msra.mxu0 0.0
        %382 = vmatpush.msra.mxu0 %v334
        %383 = vmatpush.msra.mxu0 %v305
        %384 = vmatmul.f32.gmra.mxu0 %v315
        %v385 = vpop.f32.mrf.mxu0
        %v386 = vadd.f32 0.0, %v385
        %387 = vmatmul.f32.gmra.mxu0 %v318
        %v388 = vpop.f32.mrf.mxu0
        %v389 = vadd.f32 0.0, %v388
        %390 = vmatmul.f32.gmra.mxu0 %v321
        %v391 = vpop.f32.mrf.mxu0
        %v392 = vadd.f32 0.0, %v391
        %393 = vmatmul.f32.gmra.mxu0 %v324
        %v394 = vpop.f32.mrf.mxu0
        %v395 = vadd.f32 0.0, %v394
        %396 = vmatmul.f32.gmra.mxu0 %v327
        %v397 = vpop.f32.mrf.mxu0
        %v398 = vadd.f32 0.0, %v397
        %399 = vdwg.mxu0
        %v400 = vmax.f32 %v354, 0.0
        %v401 = vmax.f32 %v386, 0.0
        %v402 = vmax.f32 %v357, 0.0
        %v403 = vmax.f32 %v389, 0.0
        %v404 = vmax.f32 %v360, 0.0
        %v405 = vmax.f32 %v392, 0.0
        %v406 = vmax.f32 %v363, 0.0
        %v407 = vmax.f32 %v395, 0.0
        %v408 = vmax.f32 %v366, 0.0
        %v409 = vmax.f32 %v398, 0.0
        %v410 = vld [vmem:[%s3] sm:$0xff]
        %vm411 = vcmask 269312
        %v413 = vsel %vm411, %v410, 0
        %v416 = vsel %vm329, %v408, 0
        %v419 = vsel %vm329, %v409, 0
        %421 = vmatpush.msra.mxu0 0.0
        %422 = vmatpush.msra.mxu0 0.0
        %423 = vmatpush.msra.mxu0 0.0
        %424 = vmatpush.msra.mxu0 0.0
        %425 = vmatpush.msra.mxu0 0.0
        %426 = vmatpush.msra.mxu0 0.0
        %427 = vmatpush.msra.mxu0 0.0
        %428 = vmatpush.msra.mxu0 0.0
        %429 = vmatpush.msra.mxu0 0.0
        %430 = vmatpush.msra.mxu0 0.0
        %431 = vmatpush.msra.mxu0 0.0
        %432 = vmatpush.msra.mxu0 %v416
        %433 = vmatpush.msra.mxu0 %v406
        %434 = vmatpush.msra.mxu0 %v404
        %435 = vmatpush.msra.mxu0 %v402
        %436 = vmatpush.msra.mxu0 %v400
        %437 = vmatmul.f32.gmra.mxu0 %v413
        %v438 = vpop.f32.mrf.mxu0
        %v439 = vadd.f32 0.0, %v438
        %440 = vdwg.mxu0
        %441 = vmatpush.msra.mxu0 0.0
        %442 = vmatpush.msra.mxu0 0.0
        %443 = vmatpush.msra.mxu0 0.0
        %444 = vmatpush.msra.mxu0 0.0
        %445 = vmatpush.msra.mxu0 0.0
        %446 = vmatpush.msra.mxu0 0.0
        %447 = vmatpush.msra.mxu0 0.0
        %448 = vmatpush.msra.mxu0 0.0
        %449 = vmatpush.msra.mxu0 0.0
        %450 = vmatpush.msra.mxu0 0.0
        %451 = vmatpush.msra.mxu0 0.0
        %452 = vmatpush.msra.mxu0 %v419
        %453 = vmatpush.msra.mxu0 %v407
        %454 = vmatpush.msra.mxu0 %v405
        %455 = vmatpush.msra.mxu0 %v403
        %456 = vmatpush.msra.mxu0 %v401
        %457 = vmatmul.f32.gmra.mxu0 %v413
        %v458 = vpop.f32.mrf.mxu0
        %v459 = vadd.f32 0.0, %v458
        %460 = vdwg.mxu0
        %v461 = vmax.f32 %v439, 0.0
        %v462 = vmax.f32 %v459, 0.0
        %v463 = vadd.f32 %v461, 0.001
        %v464 = vadd.f32 %v462, 0.001
        %v465 = vld [vmem:[%s300] sm:$0xff]
        %v466 = vld [vmem:[%s300 + $0x8] sm:$0xff]
        %v467 = vld [vmem:[%s300 + $0x10] sm:$0xff]
        %v468 = vld [vmem:[%s300 + $0x18] sm:$0xff]
        %v469 = vperm.slane %v463, 0
        %v470 = vperm.slane %v464, 0
        %v471 = vsub.f32 %v469, %v465
        %v472 = vsub.f32 %v470, %v466
        %v473 = vsub.f32 %v469, %v467
        %v474 = vsub.f32 %v470, %v468
        %v475 = vmul.f32 %v471, %v471
        %v476 = vmul.f32 %v472, %v472
        %v477 = vmul.f32 %v473, %v473
        %v478 = vmul.f32 %v474, %v474
        %v479 = vmul.f32 %v475, -300.0
        %v480 = vmul.f32 %v476, -300.0
        %v481 = vmul.f32 %v477, -300.0
        %v482 = vmul.f32 %v478, -300.0
        %v483 = vmul.f32 %v479, 1.442695
        %v484 = vpow.pop %v483
        %v485 = vmul.f32 %v480, 1.442695
        %v486 = vpow.pop %v485
        %v487 = vmul.f32 %v481, 1.442695
        %v488 = vpow.pop %v487
        %v489 = vmul.f32 %v482, 1.442695
        %v490 = vpow.pop %v489
        %v491 = vmul.f32 %v484, %v471
        %v492 = vmul.f32 %v486, %v472
        %v493 = vmul.f32 %v488, %v473
        %v494 = vmul.f32 %v490, %v474
        %v495 = vadd.f32 %v491, 0.0
        %v496 = vadd.f32 %v492, 0.0
        %v497 = vadd.f32 %v493, 0.0
        %v498 = vadd.f32 %v494, 0.0
        %v499 = vperm.slane %v463, 1
        %v500 = vperm.slane %v464, 1
        %v501 = vsub.f32 %v499, %v465
        %v502 = vsub.f32 %v500, %v466
        %v503 = vsub.f32 %v499, %v467
        %v504 = vsub.f32 %v500, %v468
        %v505 = vmul.f32 %v501, %v501
        %v506 = vmul.f32 %v502, %v502
        %v507 = vmul.f32 %v503, %v503
        %v508 = vmul.f32 %v504, %v504
        %v509 = vmul.f32 %v505, -300.0
        %v510 = vmul.f32 %v506, -300.0
        %v511 = vmul.f32 %v507, -300.0
        %v512 = vmul.f32 %v508, -300.0
        %v513 = vmul.f32 %v509, 1.442695
        %v514 = vpow.pop %v513
        %v515 = vmul.f32 %v510, 1.442695
        %v516 = vpow.pop %v515
        %v517 = vmul.f32 %v511, 1.442695
        %v518 = vpow.pop %v517
        %v519 = vmul.f32 %v512, 1.442695
        %v520 = vpow.pop %v519
        %v521 = vmul.f32 %v514, %v501
        %v522 = vmul.f32 %v516, %v502
        %v523 = vmul.f32 %v518, %v503
        %v524 = vmul.f32 %v520, %v504
        %v525 = vadd.f32 %v495, %v521
        %v526 = vadd.f32 %v496, %v522
        %v527 = vadd.f32 %v497, %v523
        %v528 = vadd.f32 %v498, %v524
        %v529 = vperm.slane %v463, 2
        %v530 = vperm.slane %v464, 2
        %v531 = vsub.f32 %v529, %v465
        %v532 = vsub.f32 %v530, %v466
        %v533 = vsub.f32 %v529, %v467
        %v534 = vsub.f32 %v530, %v468
        %v535 = vmul.f32 %v531, %v531
        %v536 = vmul.f32 %v532, %v532
        %v537 = vmul.f32 %v533, %v533
        %v538 = vmul.f32 %v534, %v534
        %v539 = vmul.f32 %v535, -300.0
        %v540 = vmul.f32 %v536, -300.0
        %v541 = vmul.f32 %v537, -300.0
        %v542 = vmul.f32 %v538, -300.0
        %v543 = vmul.f32 %v539, 1.442695
        %v544 = vpow.pop %v543
        %v545 = vmul.f32 %v540, 1.442695
        %v546 = vpow.pop %v545
        %v547 = vmul.f32 %v541, 1.442695
        %v548 = vpow.pop %v547
        %v549 = vmul.f32 %v542, 1.442695
        %v550 = vpow.pop %v549
        %v551 = vmul.f32 %v544, %v531
        %v552 = vmul.f32 %v546, %v532
        %v553 = vmul.f32 %v548, %v533
        %v554 = vmul.f32 %v550, %v534
        %v555 = vadd.f32 %v525, %v551
        %v556 = vadd.f32 %v526, %v552
        %v557 = vadd.f32 %v527, %v553
        %v558 = vadd.f32 %v528, %v554
        %v559 = vperm.slane %v463, 3
        %v560 = vperm.slane %v464, 3
        %v561 = vsub.f32 %v559, %v465
        %v562 = vsub.f32 %v560, %v466
        %v563 = vsub.f32 %v559, %v467
        %v564 = vsub.f32 %v560, %v468
        %v565 = vmul.f32 %v561, %v561
        %v566 = vmul.f32 %v562, %v562
        %v567 = vmul.f32 %v563, %v563
        %v568 = vmul.f32 %v564, %v564
        %v569 = vmul.f32 %v565, -300.0
        %v570 = vmul.f32 %v566, -300.0
        %v571 = vmul.f32 %v567, -300.0
        %v572 = vmul.f32 %v568, -300.0
        %v573 = vmul.f32 %v569, 1.442695
        %v574 = vpow.pop %v573
        %v575 = vmul.f32 %v570, 1.442695
        %v576 = vpow.pop %v575
        %v577 = vmul.f32 %v571, 1.442695
        %v578 = vpow.pop %v577
        %v579 = vmul.f32 %v572, 1.442695
        %v580 = vpow.pop %v579
        %v581 = vmul.f32 %v574, %v561
        %v582 = vmul.f32 %v576, %v562
        %v583 = vmul.f32 %v578, %v563
        %v584 = vmul.f32 %v580, %v564
        %v585 = vadd.f32 %v555, %v581
        %v586 = vadd.f32 %v556, %v582
        %v587 = vadd.f32 %v557, %v583
        %v588 = vadd.f32 %v558, %v584
        %v589 = vperm.slane %v463, 4
        %v590 = vperm.slane %v464, 4
        %v591 = vsub.f32 %v589, %v465
        %v592 = vsub.f32 %v590, %v466
        %v593 = vsub.f32 %v589, %v467
        %v594 = vsub.f32 %v590, %v468
        %v595 = vmul.f32 %v591, %v591
        %v596 = vmul.f32 %v592, %v592
        %v597 = vmul.f32 %v593, %v593
        %v598 = vmul.f32 %v594, %v594
        %v599 = vmul.f32 %v595, -300.0
        %v600 = vmul.f32 %v596, -300.0
        %v601 = vmul.f32 %v597, -300.0
        %v602 = vmul.f32 %v598, -300.0
        %v603 = vmul.f32 %v599, 1.442695
        %v604 = vpow.pop %v603
        %v605 = vmul.f32 %v600, 1.442695
        %v606 = vpow.pop %v605
        %v607 = vmul.f32 %v601, 1.442695
        %v608 = vpow.pop %v607
        %v609 = vmul.f32 %v602, 1.442695
        %v610 = vpow.pop %v609
        %v611 = vmul.f32 %v604, %v591
        %v612 = vmul.f32 %v606, %v592
        %v613 = vmul.f32 %v608, %v593
        %v614 = vmul.f32 %v610, %v594
        %v615 = vadd.f32 %v585, %v611
        %v616 = vadd.f32 %v586, %v612
        %v617 = vadd.f32 %v587, %v613
        %v618 = vadd.f32 %v588, %v614
        %v619 = vperm.slane %v463, 5
        %v620 = vperm.slane %v464, 5
        %v621 = vsub.f32 %v619, %v465
        %v622 = vsub.f32 %v620, %v466
        %v623 = vsub.f32 %v619, %v467
        %v624 = vsub.f32 %v620, %v468
        %v625 = vmul.f32 %v621, %v621
        %v626 = vmul.f32 %v622, %v622
        %v627 = vmul.f32 %v623, %v623
        %v628 = vmul.f32 %v624, %v624
        %v629 = vmul.f32 %v625, -300.0
        %v630 = vmul.f32 %v626, -300.0
        %v631 = vmul.f32 %v627, -300.0
        %v632 = vmul.f32 %v628, -300.0
        %v633 = vmul.f32 %v629, 1.442695
        %v634 = vpow.pop %v633
        %v635 = vmul.f32 %v630, 1.442695
        %v636 = vpow.pop %v635
        %v637 = vmul.f32 %v631, 1.442695
        %v638 = vpow.pop %v637
        %v639 = vmul.f32 %v632, 1.442695
        %v640 = vpow.pop %v639
        %v641 = vmul.f32 %v634, %v621
        %v642 = vmul.f32 %v636, %v622
        %v643 = vmul.f32 %v638, %v623
        %v644 = vmul.f32 %v640, %v624
        %v645 = vadd.f32 %v615, %v641
        %v646 = vadd.f32 %v616, %v642
        %v647 = vadd.f32 %v617, %v643
        %v648 = vadd.f32 %v618, %v644
        %v649 = vperm.slane %v463, 6
        %v650 = vperm.slane %v464, 6
        %v651 = vsub.f32 %v649, %v465
        %v652 = vsub.f32 %v650, %v466
        %v653 = vsub.f32 %v649, %v467
        %v654 = vsub.f32 %v650, %v468
        %v655 = vmul.f32 %v651, %v651
        %v656 = vmul.f32 %v652, %v652
        %v657 = vmul.f32 %v653, %v653
        %v658 = vmul.f32 %v654, %v654
        %v659 = vmul.f32 %v655, -300.0
        %v660 = vmul.f32 %v656, -300.0
        %v661 = vmul.f32 %v657, -300.0
        %v662 = vmul.f32 %v658, -300.0
        %v663 = vmul.f32 %v659, 1.442695
        %v664 = vpow.pop %v663
        %v665 = vmul.f32 %v660, 1.442695
        %v666 = vpow.pop %v665
        %v667 = vmul.f32 %v661, 1.442695
        %v668 = vpow.pop %v667
        %v669 = vmul.f32 %v662, 1.442695
        %v670 = vpow.pop %v669
        %v671 = vmul.f32 %v664, %v651
        %v672 = vmul.f32 %v666, %v652
        %v673 = vmul.f32 %v668, %v653
        %v674 = vmul.f32 %v670, %v654
        %v675 = vadd.f32 %v645, %v671
        %v676 = vadd.f32 %v646, %v672
        %v677 = vadd.f32 %v647, %v673
        %v678 = vadd.f32 %v648, %v674
        %v679 = vperm.slane %v463, 7
        %v680 = vperm.slane %v464, 7
        %v681 = vsub.f32 %v679, %v465
        %v682 = vsub.f32 %v680, %v466
        %v683 = vsub.f32 %v679, %v467
        %v684 = vsub.f32 %v680, %v468
        %v685 = vmul.f32 %v681, %v681
        %v686 = vmul.f32 %v682, %v682
        %v687 = vmul.f32 %v683, %v683
        %v688 = vmul.f32 %v684, %v684
        %v689 = vmul.f32 %v685, -300.0
        %v690 = vmul.f32 %v686, -300.0
        %v691 = vmul.f32 %v687, -300.0
        %v692 = vmul.f32 %v688, -300.0
        %v693 = vmul.f32 %v689, 1.442695
        %v694 = vpow.pop %v693
        %v695 = vmul.f32 %v690, 1.442695
        %v696 = vpow.pop %v695
        %v697 = vmul.f32 %v691, 1.442695
        %v698 = vpow.pop %v697
        %v699 = vmul.f32 %v692, 1.442695
        %v700 = vpow.pop %v699
        %v701 = vmul.f32 %v694, %v681
        %v702 = vmul.f32 %v696, %v682
        %v703 = vmul.f32 %v698, %v683
        %v704 = vmul.f32 %v700, %v684
        %v705 = vadd.f32 %v675, %v701
        %v706 = vadd.f32 %v676, %v702
        %v707 = vadd.f32 %v677, %v703
        %v708 = vadd.f32 %v678, %v704
        %v709 = vadd.f32 %v465, %v705
        %v710 = vadd.f32 %v466, %v706
        %v711 = vadd.f32 %v467, %v707
        %v712 = vadd.f32 %v468, %v708
        %713 = vst [vmem:[%s274] sm:$0xff] %v709
        %714 = vst [vmem:[%s274 + $0x8] sm:$0xff] %v710
        %715 = vst [vmem:[%s274 + $0x10] sm:$0xff] %v711
        %716 = vst [vmem:[%s274 + $0x18] sm:$0xff] %v712
        %v717 = vmul.f32 %v709, 9.999
        %v718 = vmul.f32 %v710, 9.999
        %v719 = vmul.f32 %v711, 9.999
        %v720 = vmul.f32 %v712, 9.999
        %v721 = vadd.f32 %v717, 0.001
        %v722 = vadd.f32 %v718, 0.001
        %v723 = vadd.f32 %v719, 0.001
        %v724 = vadd.f32 %v720, 0.001
        %v727 = vrot.slane %v721, 1
        %v728 = vrot.slane %v722, 1
        %v731 = vrot.slane %v721, 2
        %v732 = vrot.slane %v722, 2
        %v735 = vrot.slane %v721, 3
        %v736 = vrot.slane %v722, 3
        %v741 = vrot.slane %v723, 4
        %v742 = vrot.slane %v724, 4
        %v745 = vrot.slane %v723, 5
        %v746 = vrot.slane %v724, 5
        %v749 = vrot.slane %v723, 6
        %v750 = vrot.slane %v724, 6
        %v753 = vrot.slane %v723, 7
        %v754 = vrot.slane %v724, 7
        %v757 = vsel %vm329, %v721, %v727
        %v758 = vsel %vm329, %v722, %v728
        %vm759 = vcmask 1041408
        %v760 = vsel %vm759, %v757, %v731
        %v761 = vsel %vm759, %v758, %v732
        %vm762 = vcmask 1042432
        %v763 = vsel %vm762, %v760, %v735
        %v764 = vsel %vm762, %v761, %v736
        %vm765 = vcmask 1043456
        %v766 = vsel %vm765, %v763, %v741
        %v767 = vsel %vm765, %v764, %v742
        %vm768 = vcmask 1044480
        %v769 = vsel %vm768, %v766, %v745
        %v770 = vsel %vm768, %v767, %v746
        %vm771 = vcmask 1045504
        %v772 = vsel %vm771, %v769, %v749
        %v773 = vsel %vm771, %v770, %v750
        %vm774 = vcmask 1046528
        %v775 = vsel %vm774, %v772, %v753
        %v776 = vsel %vm774, %v773, %v754
        %v777 = vrot.slane %v721, 4
        %v778 = vrot.slane %v722, 4
        %v781 = vsel %vm329, %v727, %v731
        %v782 = vsel %vm329, %v728, %v732
        %v783 = vsel %vm759, %v781, %v735
        %v784 = vsel %vm759, %v782, %v736
        %v785 = vsel %vm762, %v783, %v777
        %v786 = vsel %vm762, %v784, %v778
        %v787 = vsel %vm765, %v785, %v745
        %v788 = vsel %vm765, %v786, %v746
        %v789 = vsel %vm768, %v787, %v749
        %v790 = vsel %vm768, %v788, %v750
        %v791 = vsel %vm771, %v789, %v753
        %v792 = vsel %vm771, %v790, %v754
        %v793 = vsel %vm774, %v791, %v723
        %v794 = vsel %vm774, %v792, %v724
        %v795 = vmin.f32 %v775, %v793
        %v796 = vmin.f32 %v776, %v794
        %v797 = vmax.f32 %v775, %v793
        %v798 = vmax.f32 %v776, %v794
        %v801 = vrot.slane %v795, 1
        %v802 = vrot.slane %v796, 1
        %v805 = vmin.f32 %v797, %v801
        %v806 = vmin.f32 %v798, %v802
        %v807 = vmax.f32 %v797, %v801
        %v808 = vmax.f32 %v798, %v802
        %v809 = vsel %vm774, %v805, %v797
        %v810 = vsel %vm774, %v806, %v798
        %v813 = vrot.slane %v807, 7
        %v814 = vrot.slane %v808, 7
        %v817 = vsel %vm329, %v795, %v813
        %v818 = vsel %vm329, %v796, %v814
        %v819 = vmin.f32 %v817, %v809
        %v820 = vmin.f32 %v818, %v810
        %v821 = vmax.f32 %v817, %v809
        %v822 = vmax.f32 %v818, %v810
        %v825 = vrot.slane %v819, 1
        %v826 = vrot.slane %v820, 1
        %v829 = vmin.f32 %v821, %v825
        %v830 = vmin.f32 %v822, %v826
        %v831 = vmax.f32 %v821, %v825
        %v832 = vmax.f32 %v822, %v826
        %v833 = vsel %vm774, %v829, %v821
        %v834 = vsel %vm774, %v830, %v822
        %v837 = vrot.slane %v831, 7
        %v838 = vrot.slane %v832, 7
        %v841 = vsel %vm329, %v819, %v837
        %v842 = vsel %vm329, %v820, %v838
        %v843 = vmin.f32 %v841, %v833
        %v844 = vmin.f32 %v842, %v834
        %v845 = vmax.f32 %v841, %v833
        %v846 = vmax.f32 %v842, %v834
        %v849 = vrot.slane %v843, 1
        %v850 = vrot.slane %v844, 1
        %v853 = vmin.f32 %v845, %v849
        %v854 = vmin.f32 %v846, %v850
        %v855 = vmax.f32 %v845, %v849
        %v856 = vmax.f32 %v846, %v850
        %v857 = vsel %vm774, %v853, %v845
        %v858 = vsel %vm774, %v854, %v846
        %v861 = vrot.slane %v855, 7
        %v862 = vrot.slane %v856, 7
        %v865 = vsel %vm329, %v843, %v861
        %v866 = vsel %vm329, %v844, %v862
        %v867 = vmin.f32 %v865, %v857
        %v868 = vmin.f32 %v866, %v858
        %v869 = vmax.f32 %v865, %v857
        %v870 = vmax.f32 %v866, %v858
        %v873 = vrot.slane %v867, 1
        %v874 = vrot.slane %v868, 1
        %v877 = vmin.f32 %v869, %v873
        %v878 = vmin.f32 %v870, %v874
        %v879 = vmax.f32 %v869, %v873
        %v880 = vmax.f32 %v870, %v874
        %v881 = vsel %vm774, %v877, %v869
        %v882 = vsel %vm774, %v878, %v870
        %v885 = vrot.slane %v879, 7
        %v886 = vrot.slane %v880, 7
        %v889 = vsel %vm329, %v867, %v885
        %v890 = vsel %vm329, %v868, %v886
        %v891 = vmin.f32 %v889, %v881
        %v892 = vmin.f32 %v890, %v882
        %v893 = vmax.f32 %v889, %v881
        %v894 = vmax.f32 %v890, %v882
        %v897 = vrot.slane %v891, 1
        %v898 = vrot.slane %v892, 1
        %v901 = vmin.f32 %v893, %v897
        %v902 = vmin.f32 %v894, %v898
        %v903 = vmax.f32 %v893, %v897
        %v904 = vmax.f32 %v894, %v898
        %v905 = vsel %vm774, %v901, %v893
        %v906 = vsel %vm774, %v902, %v894
        %v909 = vrot.slane %v903, 7
        %v910 = vrot.slane %v904, 7
        %v913 = vsel %vm329, %v891, %v909
        %v914 = vsel %vm329, %v892, %v910
        %v915 = vmin.f32 %v913, %v905
        %v916 = vmin.f32 %v914, %v906
        %v917 = vmax.f32 %v913, %v905
        %v918 = vmax.f32 %v914, %v906
        %v921 = vrot.slane %v915, 1
        %v922 = vrot.slane %v916, 1
        %v925 = vmin.f32 %v917, %v921
        %v926 = vmin.f32 %v918, %v922
        %v927 = vmax.f32 %v917, %v921
        %v928 = vmax.f32 %v918, %v922
        %v929 = vsel %vm774, %v925, %v917
        %v930 = vsel %vm774, %v926, %v918
        %v933 = vrot.slane %v927, 7
        %v934 = vrot.slane %v928, 7
        %v937 = vsel %vm329, %v915, %v933
        %v938 = vsel %vm329, %v916, %v934
        %v939 = vmin.f32 %v937, %v929
        %v940 = vmin.f32 %v938, %v930
        %v941 = vmax.f32 %v937, %v929
        %v942 = vmax.f32 %v938, %v930
        %v945 = vrot.slane %v939, 1
        %v946 = vrot.slane %v940, 1
        %v949 = vmin.f32 %v941, %v945
        %v950 = vmin.f32 %v942, %v946
        %v951 = vmax.f32 %v941, %v945
        %v952 = vmax.f32 %v942, %v946
        %v953 = vsel %vm774, %v949, %v941
        %v954 = vsel %vm774, %v950, %v942
        %v957 = vrot.slane %v951, 7
        %v958 = vrot.slane %v952, 7
        %v961 = vsel %vm329, %v939, %v957
        %v962 = vsel %vm329, %v940, %v958
        %v963 = vmin.f32 %v961, %v953
        %v964 = vmin.f32 %v962, %v954
        %v965 = vmax.f32 %v961, %v953
        %v966 = vmax.f32 %v962, %v954
        %v969 = vrot.slane %v963, 1
        %v970 = vrot.slane %v964, 1
        %v973 = vmin.f32 %v965, %v969
        %v974 = vmin.f32 %v966, %v970
        %v975 = vmax.f32 %v965, %v969
        %v976 = vmax.f32 %v966, %v970
        %v977 = vsel %vm774, %v973, %v965
        %v978 = vsel %vm774, %v974, %v966
        %v981 = vrot.slane %v975, 7
        %v982 = vrot.slane %v976, 7
        %v985 = vsel %vm329, %v963, %v981
        %v986 = vsel %vm329, %v964, %v982
        %v989 = vrot.slane %v977, 7
        %v990 = vrot.slane %v978, 7
        %v995 = vrot.slane %v985, 7
        %v996 = vrot.slane %v986, 7
        %v999 = vrot.slane %v977, 6
        %v1000 = vrot.slane %v978, 6
        %v1003 = vrot.slane %v985, 6
        %v1004 = vrot.slane %v986, 6
        %v1007 = vrot.slane %v977, 5
        %v1008 = vrot.slane %v978, 5
        %v1011 = vrot.slane %v985, 5
        %v1012 = vrot.slane %v986, 5
        %v1015 = vrot.slane %v977, 4
        %v1016 = vrot.slane %v978, 4
        %v1019 = vrot.slane %v985, 4
        %v1020 = vrot.slane %v986, 4
        %v1023 = vrot.slane %v977, 3
        %v1024 = vrot.slane %v978, 3
        %v1027 = vrot.slane %v985, 3
        %v1028 = vrot.slane %v986, 3
        %v1031 = vrot.slane %v977, 2
        %v1032 = vrot.slane %v978, 2
        %v1035 = vrot.slane %v985, 2
        %v1036 = vrot.slane %v986, 2
        %v1039 = vrot.slane %v977, 1
        %v1040 = vrot.slane %v978, 1
        %v1043 = vrot.slane %v985, 1
        %v1044 = vrot.slane %v986, 1
        %v1047 = vsel %vm329, %v985, %v989
        %v1048 = vsel %vm329, %v986, %v990
        %v1049 = vsel %vm759, %v1047, %v995
        %v1050 = vsel %vm759, %v1048, %v996
        %v1051 = vsel %vm762, %v1049, %v999
        %v1052 = vsel %vm762, %v1050, %v1000
        %v1053 = vsel %vm765, %v1051, %v1003
        %v1054 = vsel %vm765, %v1052, %v1004
        %v1055 = vsel %vm768, %v1053, %v1007
        %v1056 = vsel %vm768, %v1054, %v1008
        %v1057 = vsel %vm771, %v1055, %v1011
        %v1058 = vsel %vm771, %v1056, %v1012
        %v1059 = vsel %vm774, %v1057, %v1015
        %v1060 = vsel %vm774, %v1058, %v1016
        %v1061 = vsel %vm329, %v1019, %v1023
        %v1062 = vsel %vm329, %v1020, %v1024
        %v1063 = vsel %vm759, %v1061, %v1027
        %v1064 = vsel %vm759, %v1062, %v1028
        %v1065 = vsel %vm762, %v1063, %v1031
        %v1066 = vsel %vm762, %v1064, %v1032
        %v1067 = vsel %vm765, %v1065, %v1035
        %v1068 = vsel %vm765, %v1066, %v1036
        %v1069 = vsel %vm768, %v1067, %v1039
        %v1070 = vsel %vm768, %v1068, %v1040
        %v1071 = vsel %vm771, %v1069, %v1043
        %v1072 = vsel %vm771, %v1070, %v1044
        %v1073 = vsel %vm774, %v1071, %v977
        %v1074 = vsel %vm774, %v1072, %v978
        %v1075 = vmax.f32 %v1059, 0.001
        %v1076 = vmax.f32 %v1060, 0.001
        %v1077 = vmax.f32 %v1073, 0.001
        %v1078 = vmax.f32 %v1074, 0.001
        %v1079 = vmin.f32 %v1075, 10.0
        %v1080 = vmin.f32 %v1076, 10.0
        %v1081 = vmin.f32 %v1077, 10.0
        %v1082 = vmin.f32 %v1078, 10.0
        %1083 = vst [vmem:[%s281] sm:$0xff] %v1079
        %1084 = vst [vmem:[%s281 + $0x8] sm:$0xff] %v1080
        %1085 = vst [vmem:[%s281 + $0x10] sm:$0xff] %v1081
        %1086 = vst [vmem:[%s281 + $0x18] sm:$0xff] %v1082
        %s1087 = sand.u32 %s143, 1
        %s1088 = scalar_lea.sflag [#allocation3], %s1087
        %s1089 = sand.u32 %s143, 1
        %s1090 = smul.addr %s1089, 32
        %s1091 = scalar_lea.vmem [#allocation2], %s1090
        %s1092 = sand.u32 %s171, 1
        %s1093 = scalar_lea.sflag [#allocation5], %s1092
        %s1094 = sand.u32 %s171, 1
        %s1095 = smul.addr %s1094, 32
        %s1096 = scalar_lea.vmem [#allocation4], %s1095
        // Predicated region
        $region37: #{tpu_custom_call.1} parent=35 // pred_check
          %p1097 = pneg %p153
        $region38: #{tpu_custom_call.1} parent=35 // pred_check_branch
          %1099 = sbr.rel (%p1097) target = $region40
        $region39: #{tpu_custom_call.1} parent=35 // pred_region
          %s1100 = smul.u32 2, %s28
          %1102 = vsyncadd %s1088, 0
          %s1103 = smul.addr %s27, 4
          %s1104 = sadd.s32 %s1100, %s1103
          %s1105 = smul.addr %s1104, 8
          %s1106 = scalar_lea.hbm %s4, %s1105
          %s1107 = sshll.u32 %s1091, 4
          %s1108 = int_to_ptr.vmem [resolvable:$true] %s1107
          %s1109 = sshll.u32 %s1106, 4
          %s1110 = int_to_ptr.hbm [resolvable:$true] %s1109
          %1115 = dma.vmem_to_hbm [thread:$0]  %s1108, 512, %s1110, %s1088, 256, 256, 16
        $region40: #{tpu_custom_call.1} parent=35 // pred_fallthru
          _
        // Predicated region
        $region41: #{tpu_custom_call.1} parent=35 // pred_check
          %p1116 = pneg %p181
        $region42: #{tpu_custom_call.1} parent=35 // pred_check_branch
          %1118 = sbr.rel (%p1116) target = $region44
        $region43: #{tpu_custom_call.1} parent=35 // pred_region
          %s1119 = smul.u32 2, %s28
          %1121 = vsyncadd %s1093, 0
          %s1122 = smul.addr %s27, 4
          %s1123 = sadd.s32 %s1119, %s1122
          %s1124 = smul.addr %s1123, 8
          %s1125 = scalar_lea.hbm %s5, %s1124
          %s1126 = sshll.u32 %s1096, 4
          %s1127 = int_to_ptr.vmem [resolvable:$true] %s1126
          %s1128 = sshll.u32 %s1125, 4
          %s1129 = int_to_ptr.hbm [resolvable:$true] %s1128
          %1134 = dma.vmem_to_hbm [thread:$0]  %s1127, 512, %s1129, %s1093, 256, 256, 16
        $region44: #{tpu_custom_call.1} parent=35 // pred_fallthru
          _
      $region36: #{tpu_custom_call.1} parent=5 // pred_fallthru
        _
      %p1135 = scmp.le.s32.totalorder 2, %s18
      // Predicated region
      $region45: #{tpu_custom_call.1} parent=5 // pred_check
        %p1136 = pneg %p1135
      $region46: #{tpu_custom_call.1} parent=5 // pred_check_branch
        %1138 = sbr.rel (%p1136) target = $region48
      $region47: #{tpu_custom_call.1} parent=5 // pred_region
        %s1139 = ssub.s32 %s18, 2
        // Predicated region
        $region49: #{tpu_custom_call.1} parent=47 // pred_check
          %p1140 = pneg %p159
        $region50: #{tpu_custom_call.1} parent=47 // pred_check_branch
          %1142 = sbr.rel (%p1140) target = $region52
        $region51: #{tpu_custom_call.1} parent=47 // pred_region
          %s1143 = sand.u32 %s144, 1
          %s1144 = scalar_lea.sflag [#allocation3], %s1143
          %s1145 = sand.u32 %s144, 1
          %s1146 = smul.addr %s1145, 32
          %s1147 = scalar_lea.vmem [#allocation2], %s1146
          %1149 = dma.done %s1144, 512
        $region52: #{tpu_custom_call.1} parent=47 // pred_fallthru
          _
        // Predicated region
        $region53: #{tpu_custom_call.1} parent=47 // pred_check
          %p1150 = pneg %p187
        $region54: #{tpu_custom_call.1} parent=47 // pred_check_branch
          %1152 = sbr.rel (%p1150) target = $region56
        $region55: #{tpu_custom_call.1} parent=47 // pred_region
          %s1153 = sand.u32 %s172, 1
          %s1154 = scalar_lea.sflag [#allocation5], %s1153
          %s1155 = sand.u32 %s172, 1
          %s1156 = smul.addr %s1155, 32
          %s1157 = scalar_lea.vmem [#allocation4], %s1156
          %1159 = dma.done %s1154, 512
        $region56: #{tpu_custom_call.1} parent=47 // pred_fallthru
          _
      $region48: #{tpu_custom_call.1} parent=5 // pred_fallthru
        _
    $region6: #{tpu_custom_call.1} parent=1 // loop_footer
      %s22 = sadd.s32 1, %s18
    $region7: #{tpu_custom_call.1} parent=1 // loop_footer_branch
      %17 = sbr.rel target = $region3
    $region8: #{tpu_custom_call.1} parent=1 // loop_exit
      _
    %1160 = vsyncpa [#allocation3], 1
    %s1161 = scalar_lea.sflag [#allocation3], 1
    %1162 = vsyncpa %s1161, 1
    %1163 = vsyncpa [#allocation5], 1
    %s1164 = scalar_lea.sflag [#allocation5], 1
    %1165 = vsyncpa %s1164, 1

</llo_original>
